<compile_context>
chip_gen: v7x
topology: tpu7x:2x2x1
jax: 0.10.0
libtpu: 0.0.40
codegen_flags: <defaults>
</compile_context>

<pallas_src>
import math
import functools

import jax
import jax.numpy as jnp
from jax import lax
from jax.experimental import pallas as pl
from jax.experimental.pallas import tpu as pltpu


def _attn_kernel(seed_ref, q_ref, k_ref, v_ref, m_ref, *rest,
                 tq, scale, drop_p, use_hw_prng):
    if drop_p > 0.0 and not use_hw_prng:
        keep_ref, o_ref = rest
    else:
        (o_ref,) = rest

    h = pl.program_id(0)
    i = pl.program_id(1)

    # f32 -> bf16 casts done in-kernel (VPU work hidden under the MXU);
    # 1/sqrt(D) applied on the f32 q tile for a bit more accuracy.
    q = (q_ref[...] * scale).astype(jnp.bfloat16)      # (tq, D)
    k = k_ref[...].astype(jnp.bfloat16)                 # (S,  D)
    v = v_ref[...].astype(jnp.bfloat16)                 # (S,  D)

    # scores: contract D against D directly (no materialized k.T)
    s = lax.dot_general(q, k, (((1,), (1,)), ((), ())),
                        preferred_element_type=jnp.float32)      # (tq, S) f32

    # additive mask: full (S, S) block is VMEM-resident; slice this q-tile's rows
    row0 = pl.multiple_of(i * tq, tq)
    s = s + m_ref[pl.ds(row0, tq), :]

    # numerically-stable softmax numerator; normalization deferred past the PV matmul
    s_max = jnp.max(s, axis=-1, keepdims=True)
    e = jnp.exp(s - s_max)                                        # (tq, S) f32
    row_sum = jnp.sum(e, axis=-1, keepdims=True)                  # (tq, 1)  f32

    p = e.astype(jnp.bfloat16)
    if drop_p > 0.0:
        if use_hw_prng:
            # per-tile seed: (base_seed, head, q-tile)
            pltpu.prng_seed(seed_ref[0], h, i)
            bits = pltpu.bitcast(pltpu.prng_random_bits(p.shape), jnp.uint32)
            thresh = jnp.uint32(int(drop_p * (2.0 ** 32)))
            keep = bits >= thresh                                 # P(keep) = 1 - drop_p
        else:
            keep = keep_ref[...] != 0                             # int8 host-streamed mask
        p = jnp.where(keep, p, jnp.zeros_like(p))

    acc = jnp.dot(p, v, preferred_element_type=jnp.float32)       # (tq, D) f32

    # deferred softmax normalization + dropout 1/keep_p rescale on the small tile
    denom = row_sum * (1.0 - drop_p)
    o_ref[...] = (acc * pl.reciprocal(denom, approx=True)).astype(o_ref.dtype)


def sdpa_dropout(query, key, value, attn_mask, *, dropout_p=0.1, seed=0,
                 tq=256, use_hw_prng=None):
    """query/key/value: (B, H, S, D) f32; attn_mask: (1,1,S,S) or (S,S) f32."""
    B, H, S, D = query.shape
    assert key.shape == (B, H, S, D) and value.shape == (B, H, S, D)
    BH = B * H

    tq = min(tq, S)
    assert S % tq == 0

    if use_hw_prng is None:
        # Hardware PRNG only lowers on real TPUs; fall back to a host-streamed
        # int8 keep-mask elsewhere (interpret/test environments).
        use_hw_prng = jax.default_backend() == "tpu"

    q = query.reshape(BH, S, D).astype(jnp.float32)
    k = key.reshape(BH, S, D).astype(jnp.float32)
    v = value.reshape(BH, S, D).astype(jnp.float32)
    mask2d = attn_mask.reshape(attn_mask.shape[-2], attn_mask.shape[-1]).astype(jnp.float32)
    assert mask2d.shape == (S, S)

    scale = 1.0 / math.sqrt(D)
    seed_arr = jnp.asarray([seed], dtype=jnp.int32)

    kernel = functools.partial(_attn_kernel, tq=tq, scale=scale,
                               drop_p=float(dropout_p), use_hw_prng=use_hw_prng)

    in_specs = [
        pl.BlockSpec((None, tq, D), lambda h, i, sref: (h, i, 0)),  # q tile (f32)
        pl.BlockSpec((None, S, D), lambda h, i, sref: (h, 0, 0)),   # full K per head
        pl.BlockSpec((None, S, D), lambda h, i, sref: (h, 0, 0)),   # full V per head
        pl.BlockSpec((S, S), lambda h, i, sref: (0, 0)),            # mask resident
    ]
    args = [q, k, v, mask2d]

    if dropout_p > 0.0 and not use_hw_prng:
        keep = (jax.random.uniform(jax.random.PRNGKey(seed), (BH, S, S))
                >= dropout_p).astype(jnp.int8)
        in_specs.append(pl.BlockSpec((None, tq, S), lambda h, i, sref: (h, i, 0)))
        args.append(keep)

    grid_spec = pltpu.PrefetchScalarGridSpec(
        num_scalar_prefetch=1,
        grid=(BH, S // tq),
        in_specs=in_specs,
        out_specs=pl.BlockSpec((None, tq, D), lambda h, i, sref: (h, i, 0)),
    )

    cost = pl.CostEstimate(
        flops=4 * BH * S * S * D,
        transcendentals=BH * S * S,
        bytes_accessed=int(3 * BH * S * D * 4 + S * S * 4 + BH * S * D * 4),
    )

    out = pl.pallas_call(
        kernel,
        out_shape=jax.ShapeDtypeStruct((BH, S, D), jnp.float32),
        grid_spec=grid_spec,
        compiler_params=pltpu.CompilerParams(
            dimension_semantics=("parallel", "parallel"),
            vmem_limit_bytes=48 * 1024 * 1024,
        ),
        cost_estimate=cost,
    )(seed_arr, *args)

    return out.reshape(B, H, S, D)


if __name__ == "__main__":
    # Small shapes consistent with the module (orig: B=1, H=8, S=1024, D=128).
    B, H, S, D = 1, 4, 256, 128

    root = jax.random.PRNGKey(0)
    kq, kk, kv, km = jax.random.split(root, 4)
    query = jax.random.normal(kq, (B, H, S, D), dtype=jnp.float32)
    key = jax.random.normal(kk, (B, H, S, D), dtype=jnp.float32)
    value = jax.random.normal(kv, (B, H, S, D), dtype=jnp.float32)
    attn_mask = jax.random.normal(km, (1, 1, S, S), dtype=jnp.float32)

    # Pure-JAX f32 reference (no dropout).
    scores = jnp.einsum("bhqd,bhkd->bhqk", query, key) / math.sqrt(D) + attn_mask
    ref = jnp.einsum("bhqk,bhkd->bhqd", jax.nn.softmax(scores, axis=-1), value)

    # 1) Exact-math check: same kernel with the dropout branch compiled out.
    out0 = jax.block_until_ready(
        sdpa_dropout(query, key, value, attn_mask, dropout_p=0.0, seed=0))
    assert out0.shape == (B, H, S, D) and out0.dtype == jnp.float32
    max_err = float(jnp.max(jnp.abs(out0 - ref)))
    mean_err = float(jnp.mean(jnp.abs(out0 - ref)))
    assert max_err < 0.2 and mean_err < 1e-2, f"no-dropout: max={max_err} mean={mean_err}"

    # 2) Module-faithful run: softmax -> dropout(p=0.1, train=True) -> @ v.
    out = jax.block_until_ready(
        sdpa_dropout(query, key, value, attn_mask, dropout_p=0.1, seed=1234))
    assert out.shape == (B, H, S, D) and out.dtype == jnp.float32
    assert bool(jnp.isfinite(out).all())
    # Statistical sanity: dropout output scatters around the no-dropout expectation
    # (E[dropout(p)/keep_p @ v] == softmax @ v), and the mask must actually fire.
    diff = jnp.abs(out - ref)
    mean_diff = float(jnp.mean(diff))
    assert 1e-4 < mean_diff < 0.2, f"dropout: mean diff={mean_diff}"

    print("KERNEL_OK")
</pallas_src>

<mosaic_0001>
module attributes {stable_mosaic.version = 11 : i64} {
  func.func @_attn_kernel(%arg0: i32, %arg1: i32, %arg2: memref<1xi32, #tpu.memory_space<smem>>, %arg3: memref<1x256x128xf32, #tpu.memory_space<vmem>>, %arg4: memref<1x256x128xf32, #tpu.memory_space<vmem>>, %arg5: memref<1x256x128xf32, #tpu.memory_space<vmem>>, %arg6: memref<256x256xf32, #tpu.memory_space<vmem>>, %arg7: memref<1x256x128xf32, #tpu.memory_space<vmem>>) attributes {dimension_semantics = [#tpu.dimension_semantics<parallel>, #tpu.dimension_semantics<parallel>], iteration_bounds = array<i64: 4, 1>, scalar_prefetch = 1 : i64, scratch_operands = 0 : i64, tpu.core_type = #tpu.core_type<tc>, window_params = [{transform_indices = @transform_0, window_bounds = array<i64: 1, 256, 128>}, {transform_indices = @transform_1, window_bounds = array<i64: 1, 256, 128>}, {transform_indices = @transform_2, window_bounds = array<i64: 1, 256, 128>}, {pipeline_mode = #tpu.pipeline_mode<synchronous>, transform_indices = @transform_3, window_bounds = array<i64: 256, 256>}, {transform_indices = @transform_4, window_bounds = array<i64: 1, 256, 128>}]} {
    %c0 = arith.constant 0 : index
    %c0_0 = arith.constant 0 : index
    %c0_1 = arith.constant 0 : index
    %0 = vector.load %arg3[%c0, %c0_0, %c0_1] : memref<1x256x128xf32, #tpu.memory_space<vmem>>, vector<1x256x128xf32>
    %1 = vector.shape_cast %0 : vector<1x256x128xf32> to vector<256x128xf32>
    %cst = arith.constant 0.0883883461 : f32
    %2 = vector.broadcast %cst : f32 to vector<256x128xf32>
    %3 = arith.mulf %1, %2 : vector<256x128xf32>
    %4 = arith.truncf %3 : vector<256x128xf32> to vector<256x128xbf16>
    %c0_2 = arith.constant 0 : index
    %c0_3 = arith.constant 0 : index
    %c0_4 = arith.constant 0 : index
    %5 = vector.load %arg4[%c0_2, %c0_3, %c0_4] : memref<1x256x128xf32, #tpu.memory_space<vmem>>, vector<1x256x128xf32>
    %6 = vector.shape_cast %5 : vector<1x256x128xf32> to vector<256x128xf32>
    %7 = arith.truncf %6 : vector<256x128xf32> to vector<256x128xbf16>
    %c0_5 = arith.constant 0 : index
    %c0_6 = arith.constant 0 : index
    %c0_7 = arith.constant 0 : index
    %8 = vector.load %arg5[%c0_5, %c0_6, %c0_7] : memref<1x256x128xf32, #tpu.memory_space<vmem>>, vector<1x256x128xf32>
    %9 = vector.shape_cast %8 : vector<1x256x128xf32> to vector<256x128xf32>
    %10 = arith.truncf %9 : vector<256x128xf32> to vector<256x128xbf16>
    %cst_8 = arith.constant dense<0.000000e+00> : vector<256x256xf32>
    %11 = tpu.matmul %4, %7, %cst_8 {dimension_numbers = #tpu.dot_dimension_numbers<[1], [1], [0], [0], [0, 0, 1, 0], [], []>} : vector<256x128xbf16>, vector<256x128xbf16>, vector<256x256xf32> -> vector<256x256xf32>
    %c256_i32 = arith.constant 256 : i32
    %12 = arith.muli %arg1, %c256_i32 : i32
    %13 = tpu.assume_multiple %12, 256 : i32
    %14 = arith.index_cast %13 : i32 to index
    %c0_9 = arith.constant 0 : index
    %15 = vector.load %arg6[%14, %c0_9] : memref<256x256xf32, #tpu.memory_space<vmem>>, vector<256x256xf32>
    %16 = arith.addf %11, %15 : vector<256x256xf32>
    %cst_10 = arith.constant dense<0xFF800000> : vector<256xf32>
    %17 = vector.multi_reduction <maximumf>, %16, %cst_10 [1] : vector<256x256xf32> to vector<256xf32>
    %18 = vector.shape_cast %17 : vector<256xf32> to vector<256x1xf32>
    %19 = vector.broadcast %18 : vector<256x1xf32> to vector<256x256xf32>
    %20 = arith.subf %16, %19 : vector<256x256xf32>
    %21 = math.exp %20 : vector<256x256xf32>
    %cst_11 = arith.constant dense<0.000000e+00> : vector<256xf32>
    %22 = vector.multi_reduction <add>, %21, %cst_11 [1] : vector<256x256xf32> to vector<256xf32>
    %23 = vector.shape_cast %22 : vector<256xf32> to vector<256x1xf32>
    %24 = arith.truncf %21 : vector<256x256xf32> to vector<256x256xbf16>
    %cst_12 = arith.constant dense<0.000000e+00> : vector<256x128xf32>
    %25 = tpu.matmul %24, %10, %cst_12 {dimension_numbers = #tpu.dot_dimension_numbers<[1], [0], [0], [1], [0, 0, 1, 1], [], []>} : vector<256x256xbf16>, vector<256x128xbf16>, vector<256x128xf32> -> vector<256x128xf32>
    %cst_13 = arith.constant 1.000000e+00 : f32
    %26 = vector.broadcast %cst_13 : f32 to vector<256x1xf32>
    %27 = arith.mulf %23, %26 : vector<256x1xf32>
    %28 = tpu.reciprocal %27 {approx = true} : vector<256x1xf32> -> vector<256x1xf32>
    %29 = vector.broadcast %28 : vector<256x1xf32> to vector<256x128xf32>
    %30 = arith.mulf %25, %29 : vector<256x128xf32>
    %c0_14 = arith.constant 0 : index
    %c0_15 = arith.constant 0 : index
    %c0_16 = arith.constant 0 : index
    %31 = vector.load %arg7[%c0_14, %c0_15, %c0_16] : memref<1x256x128xf32, #tpu.memory_space<vmem>>, vector<1x256x128xf32>
    %32 = vector.shape_cast %31 : vector<1x256x128xf32> to vector<256x128xf32>
    %33 = vector.shape_cast %30 : vector<256x128xf32> to vector<1x256x128xf32>
    tpu.vector_store %arg7[%c0_14, %c0_15, %c0_16], %33 {strides = array<i32>} : memref<1x256x128xf32, #tpu.memory_space<vmem>>, vector<1x256x128xf32>,
    return
  }
  func.func @transform_0(%arg0: i32, %arg1: i32, %arg2: memref<1xi32, #tpu.memory_space<smem>>) -> (i32, i32, i32) {
    %c0_i32 = arith.constant 0 : i32
    %c0_i32_0 = arith.constant 0 : i32
    return %arg0, %arg1, %c0_i32 : i32, i32, i32
  }
  func.func @transform_1(%arg0: i32, %arg1: i32, %arg2: memref<1xi32, #tpu.memory_space<smem>>) -> (i32, i32, i32) {
    %c0_i32 = arith.constant 0 : i32
    %c0_i32_0 = arith.constant 0 : i32
    %c0_i32_1 = arith.constant 0 : i32
    return %arg0, %c0_i32, %c0_i32_0 : i32, i32, i32
  }
  func.func @transform_2(%arg0: i32, %arg1: i32, %arg2: memref<1xi32, #tpu.memory_space<smem>>) -> (i32, i32, i32) {
    %c0_i32 = arith.constant 0 : i32
    %c0_i32_0 = arith.constant 0 : i32
    %c0_i32_1 = arith.constant 0 : i32
    return %arg0, %c0_i32, %c0_i32_0 : i32, i32, i32
  }
  func.func @transform_3(%arg0: i32, %arg1: i32, %arg2: memref<1xi32, #tpu.memory_space<smem>>) -> (i32, i32) {
    %c0_i32 = arith.constant 0 : i32
    %c0_i32_0 = arith.constant 0 : i32
    %c0_i32_1 = arith.constant 0 : i32
    return %c0_i32, %c0_i32_0 : i32, i32
  }
  func.func @transform_4(%arg0: i32, %arg1: i32, %arg2: memref<1xi32, #tpu.memory_space<smem>>) -> (i32, i32, i32) {
    %c0_i32 = arith.constant 0 : i32
    %c0_i32_0 = arith.constant 0 : i32
    return %arg0, %arg1, %c0_i32 : i32, i32, i32
  }
}

</mosaic_0001>

<llo_original>
// kernel: tpu_custom_call.1
$region0: #{tpu_custom_call.1}
  #allocation0 [shape = 'u32[]', space=smem, size = 0x4, offset = 0x4, fixed_abs, tag = 'smem constant byte address 0x4 - core index']
  #allocation1 [shape = 'u32[144,128]{1,0:T(1,128)}', space=vmem, size = 0x12000, scoped, tag = 'internal scratch']
  #allocation2 [shape = 's32[1]{0}', space=sflag, size = 0x4, scoped, tag = 'scoped memory for tpu_custom_call.1']
  #allocation3 [shape = 's32[1]{0:T(128)S(6)}', space=smem, size = 0x200, scoped, tag = 'prefetched SMEM operand 0']
  %s0 = inlined_call_operand.<no memory space> [shape: s32[1], index: 0, kind: input, shape index: {}]
  %s1 = inlined_call_operand.hbm [shape: f32[4,256,128], index: 1, kind: input, shape index: {}]
  %s2 = inlined_call_operand.hbm [shape: f32[4,256,128], index: 2, kind: input, shape index: {}]
  %s3 = inlined_call_operand.hbm [shape: f32[4,256,128], index: 3, kind: input, shape index: {}]
  %s4 = inlined_call_operand.hbm [shape: f32[256,256], index: 4, kind: input, shape index: {}]
  %s5 = inlined_call_operand.hbm [shape: f32[4,256,128], index: 5, kind: output, shape index: {}]
  %s6 = sld [smem:[#allocation0]]
  $region65: #{tpu_custom_call.1} parent=0
    _
  %s8 = ssub.s32 1, %s6
  %s9 = scalar_select 0, %s8, %s6
  %10 = sst [smem:[#allocation3]] %s0
  $region1: #{tpu_custom_call.1} parent=0
    #allocation4 [shape = 'u8[262144]{0}', space=vmem, size = 0x40000, scoped, tag = 'input window, operand 1']
    #allocation5 [shape = 's32[2]{0}', space=sflag, size = 0x8, scoped, tag = 'scoped memory for tpu_custom_call.1']
    #allocation6 [shape = 's32[2]{0}', space=sflag, size = 0x8, scoped, tag = 'scoped memory for tpu_custom_call.1']
    #allocation7 [shape = 'u8[262144]{0}', space=vmem, size = 0x40000, scoped, tag = 'input window, operand 2']
    #allocation8 [shape = 's32[2]{0}', space=sflag, size = 0x8, scoped, tag = 'scoped memory for tpu_custom_call.1']
    #allocation9 [shape = 'u8[262144]{0}', space=vmem, size = 0x40000, scoped, tag = 'input window, operand 3']
    #allocation10 [shape = 'u8[262144]{0}', space=vmem, size = 0x40000, scoped, tag = 'input window, operand 4, single buffered']
    #allocation11 [shape = 's32[1]{0}', space=sflag, size = 0x4, scoped, tag = 'scoped memory for tpu_custom_call.1']
    #allocation12 [shape = 'u8[262144]{0}', space=vmem, size = 0x40000, scoped, tag = 'output window, operand 0']
    %11 = vsyncpa [#allocation5], 0
    %s12 = scalar_lea.sflag [#allocation5], 1
    %13 = vsyncpa %s12, 0
    %14 = vsyncpa [#allocation8], 0
    %s15 = scalar_lea.sflag [#allocation8], 1
    %16 = vsyncpa %s15, 0
    %17 = vsyncpa [#allocation11], 0
    %18 = vsyncpa [#allocation6], 0
    %s19 = scalar_lea.sflag [#allocation6], 1
    %20 = vsyncpa %s19, 0
    loop: start=0, step=1, limit=6
    $region2: #{tpu_custom_call.1} parent=1 // loop_pre_header
      _
    $region3: #{tpu_custom_call.1} parent=1 // loop_header
      %s22 = sphi 0, %s26
      %p23 = scmp.ge.s32.totalorder %s22, 6
      %s29 = sphi 0, %s41
      %s30 = sphi 0, %s37
      %s31 = sphi 0, %s29
      %s32 = sphi 0, %s30
      %s33 = sphi 0, %s31
      %s34 = sphi 0, %s32
      %s46 = sphi 0, %s48
      %s49 = sphi 0, %s46
      %s50 = sphi 0, %s49
      %s66 = sphi 0, %s50
      %s72 = sphi 0, %s74
      %s75 = sphi 0, %s72
      %s76 = sphi 0, %s75
      %s92 = sphi 0, %s76
      %s98 = sphi 0, %s100
      %s101 = sphi 0, %s98
      %s102 = sphi 0, %s101
      %s118 = sphi 0, %s102
      %s122 = sphi 0, %s122
      %s124 = sphi 0, %s122
      %s125 = sphi 0, %s124
      %s139 = sphi 0, %s125
      %s147 = sphi 0, %s149
      %s150 = sphi 0, %s147
      %s151 = sphi 0, %s150
      %s167 = sphi 0, %s151
    $region4: #{tpu_custom_call.1} parent=1 // loop_header_branch
      %25 = sbr.rel (%p23) target = $region8
    $region5: #{tpu_custom_call.1} parent=1 // loop_body
      %s27 = ssub.s32 %s22, 1
      %s28 = ssub.s32 %s22, 2
      %s35 = sadd.s32 1, %s30
      %p36 = scmp.ge.s32.totalorder %s35, 1
      %s37 = scalar_select %p36, 0, %s35
      %s38 = sadd.s32 1, %s29
      %s39 = scalar_select %p36, %s38, %s29
      %p40 = scmp.ge.s32.totalorder %s39, 4
      %s41 = scalar_select %p40, 0, %s39
      %s42 = ssub.s32 %s29, %s41
      %s43 = ssub.s32 %s30, %s37
      %s44 = sor.u32 %s42, %s43
      %p45 = scmp.eq.s32.totalorder %s44, 0
      %s47 = sadd.s32 %s46, 1
      %s48 = scalar_select %p45, %s46, %s47
      %p51 = pneg %p45
      %p52 = scmp.eq.s32.totalorder %s22, 3
      %p53 = por %p51, %p52
      %p54 = scmp.ne.s32.totalorder %s46, %s49
      %p55 = scmp.eq.s32.totalorder %s22, 0
      %p56 = por %p54, %p55
      %p57 = scmp.ne.s32.totalorder %s46, %s49
      %p58 = scmp.eq.s32.totalorder %s27, 3
      %p59 = por %p57, %p58
      %p60 = scmp.ne.s32.totalorder %s49, %s50
      %p61 = scmp.eq.s32.totalorder %s27, 0
      %p62 = por %p60, %p61
      %p63 = scmp.ne.s32.totalorder %s49, %s50
      %p64 = scmp.eq.s32.totalorder %s28, 3
      %p65 = por %p63, %p64
      %p67 = scmp.ne.s32.totalorder %s50, %s66
      %p68 = scmp.eq.s32.totalorder %s28, 0
      %p69 = por %p67, %p68
      %s70 = ssub.s32 %s29, %s41
      %p71 = scmp.eq.s32.totalorder %s70, 0
      %s73 = sadd.s32 %s72, 1
      %s74 = scalar_select %p71, %s72, %s73
      %p77 = pneg %p71
      %p78 = scmp.eq.s32.totalorder %s22, 3
      %p79 = por %p77, %p78
      %p80 = scmp.ne.s32.totalorder %s72, %s75
      %p81 = scmp.eq.s32.totalorder %s22, 0
      %p82 = por %p80, %p81
      %p83 = scmp.ne.s32.totalorder %s72, %s75
      %p84 = scmp.eq.s32.totalorder %s27, 3
      %p85 = por %p83, %p84
      %p86 = scmp.ne.s32.totalorder %s75, %s76
      %p87 = scmp.eq.s32.totalorder %s27, 0
      %p88 = por %p86, %p87
      %p89 = scmp.ne.s32.totalorder %s75, %s76
      %p90 = scmp.eq.s32.totalorder %s28, 3
      %p91 = por %p89, %p90
      %p93 = scmp.ne.s32.totalorder %s76, %s92
      %p94 = scmp.eq.s32.totalorder %s28, 0
      %p95 = por %p93, %p94
      %s96 = ssub.s32 %s29, %s41
      %p97 = scmp.eq.s32.totalorder %s96, 0
      %s99 = sadd.s32 %s98, 1
      %s100 = scalar_select %p97, %s98, %s99
      %p103 = pneg %p97
      %p104 = scmp.eq.s32.totalorder %s22, 3
      %p105 = por %p103, %p104
      %p106 = scmp.ne.s32.totalorder %s98, %s101
      %p107 = scmp.eq.s32.totalorder %s22, 0
      %p108 = por %p106, %p107
      %p109 = scmp.ne.s32.totalorder %s98, %s101
      %p110 = scmp.eq.s32.totalorder %s27, 3
      %p111 = por %p109, %p110
      %p112 = scmp.ne.s32.totalorder %s101, %s102
      %p113 = scmp.eq.s32.totalorder %s27, 0
      %p114 = por %p112, %p113
      %p115 = scmp.ne.s32.totalorder %s101, %s102
      %p116 = scmp.eq.s32.totalorder %s28, 3
      %p117 = por %p115, %p116
      %p119 = scmp.ne.s32.totalorder %s102, %s118
      %p120 = scmp.eq.s32.totalorder %s28, 0
      %p121 = por %p119, %p120
      %s123 = sadd.s32 %s122, 1
      %p126 = scmp.eq.s32.totalorder %s22, 3
      %p127 = scmp.ne.s32.totalorder %s122, %s124
      %p128 = scmp.eq.s32.totalorder %s22, 0
      %p129 = por %p127, %p128
      %p130 = scmp.ne.s32.totalorder %s122, %s124
      %p131 = scmp.eq.s32.totalorder %s27, 3
      %p132 = por %p130, %p131
      %p133 = scmp.ne.s32.totalorder %s124, %s125
      %p134 = scmp.eq.s32.totalorder %s27, 0
      %p135 = por %p133, %p134
      %p136 = scmp.ne.s32.totalorder %s124, %s125
      %p137 = scmp.eq.s32.totalorder %s28, 3
      %p138 = por %p136, %p137
      %p140 = scmp.ne.s32.totalorder %s125, %s139
      %p141 = scmp.eq.s32.totalorder %s28, 0
      %p142 = por %p140, %p141
      %s143 = ssub.s32 %s29, %s41
      %s144 = ssub.s32 %s30, %s37
      %s145 = sor.u32 %s143, %s144
      %p146 = scmp.eq.s32.totalorder %s145, 0
      %s148 = sadd.s32 %s147, 1
      %s149 = scalar_select %p146, %s147, %s148
      %p152 = pneg %p146
      %p153 = scmp.eq.s32.totalorder %s22, 3
      %p154 = por %p152, %p153
      %p155 = scmp.ne.s32.totalorder %s147, %s150
      %p156 = scmp.eq.s32.totalorder %s22, 0
      %p157 = por %p155, %p156
      %p158 = scmp.ne.s32.totalorder %s147, %s150
      %p159 = scmp.eq.s32.totalorder %s27, 3
      %p160 = por %p158, %p159
      %p161 = scmp.ne.s32.totalorder %s150, %s151
      %p162 = scmp.eq.s32.totalorder %s27, 0
      %p163 = por %p161, %p162
      %p164 = scmp.ne.s32.totalorder %s150, %s151
      %p165 = scmp.eq.s32.totalorder %s28, 3
      %p166 = por %p164, %p165
      %p168 = scmp.ne.s32.totalorder %s151, %s167
      %p169 = scmp.eq.s32.totalorder %s28, 0
      %p170 = por %p168, %p169
      %p171 = scmp.le.s32.totalorder 1, %s22
      %p172 = scmp.lt.s32.totalorder %s22, 5
      %p173 = pnand %p171, %p172
      %p174 = pneg %p173
      // Predicated region
      $region9: #{tpu_custom_call.1} parent=5 // pred_check
        _
      $region10: #{tpu_custom_call.1} parent=5 // pred_check_branch
        %176 = sbr.rel (%p173) target = $region12
      $region11: #{tpu_custom_call.1} parent=5 // pred_region
        %s177 = ssub.s32 %s22, 1
        // Predicated region
        $region13: #{tpu_custom_call.1} parent=11 // pred_check
          %p178 = pneg %p135
        $region14: #{tpu_custom_call.1} parent=11 // pred_check_branch
          %180 = sbr.rel (%p178) target = $region16
        $region15: #{tpu_custom_call.1} parent=11 // pred_region
          %s182 = ssub.s32 8192, 8192
          %183 = vsyncadd [#allocation11], %s182
          %s184 = sshll.u32 [#allocation10], 4
          %s185 = int_to_ptr.vmem [resolvable:$true] %s184
          %190 = dma.hbm_to_vmem [thread:$0]  %s4, 8192, %s185, [#allocation11], 256, 256, 16
        $region16: #{tpu_custom_call.1} parent=11 // pred_fallthru
          _
      $region12: #{tpu_custom_call.1} parent=5 // pred_fallthru
        _
      %p191 = scmp.lt.s32.totalorder %s22, 4
      // Predicated region
      $region17: #{tpu_custom_call.1} parent=5 // pred_check
        %p192 = pneg %p191
      $region18: #{tpu_custom_call.1} parent=5 // pred_check_branch
        %194 = sbr.rel (%p192) target = $region20
      $region19: #{tpu_custom_call.1} parent=5 // pred_region
        // Predicated region
        $region21: #{tpu_custom_call.1} parent=19 // pred_check
          %p195 = pneg %p56
        $region22: #{tpu_custom_call.1} parent=19 // pred_check_branch
          %197 = sbr.rel (%p195) target = $region24
        $region23: #{tpu_custom_call.1} parent=19 // pred_region
          %s198 = sand.u32 %s46, 1
          %s199 = scalar_lea.sflag [#allocation5], %s198
          %s200 = sand.u32 %s46, 1
          %s201 = smul.addr %s200, 256
          %s202 = scalar_lea.vmem [#allocation4], %s201
          %s203 = smul.u32 32, %s30
          %s205 = ssub.s32 4096, 4096
          %206 = vsyncadd %s199, %s205
          %s207 = smul.addr %s29, 32
          %s208 = sadd.s32 %s203, %s207
          %s209 = smul.addr %s208, 128
          %s210 = scalar_lea.hbm %s1, %s209
          %s211 = sshll.u32 %s202, 4
          %s212 = int_to_ptr.vmem [resolvable:$true] %s211
          %217 = dma.hbm_to_vmem [thread:$0]  %s210, 4096, %s212, %s199, 128, 128, 8
        $region24: #{tpu_custom_call.1} parent=19 // pred_fallthru
          _
        // Predicated region
        $region25: #{tpu_custom_call.1} parent=19 // pred_check
          %p218 = pneg %p82
        $region26: #{tpu_custom_call.1} parent=19 // pred_check_branch
          %220 = sbr.rel (%p218) target = $region28
        $region27: #{tpu_custom_call.1} parent=19 // pred_region
          %s221 = sand.u32 %s22, 1
          %s222 = scalar_lea.sflag [#allocation8], %s221
          %s223 = sand.u32 %s72, 1
          %s224 = smul.addr %s223, 256
          %s225 = scalar_lea.vmem [#allocation7], %s224
          %s227 = ssub.s32 4096, 4096
          %228 = vsyncadd %s222, %s227
          %s229 = smul.addr %s29, 32
          %s230 = smul.addr %s229, 128
          %s231 = scalar_lea.hbm %s2, %s230
          %s232 = sshll.u32 %s225, 4
          %s233 = int_to_ptr.vmem [resolvable:$true] %s232
          %238 = dma.hbm_to_vmem [thread:$0]  %s231, 4096, %s233, %s222, 128, 128, 8
        $region28: #{tpu_custom_call.1} parent=19 // pred_fallthru
          _
        // Predicated region
        $region29: #{tpu_custom_call.1} parent=19 // pred_check
          %p239 = pneg %p108
        $region30: #{tpu_custom_call.1} parent=19 // pred_check_branch
          %241 = sbr.rel (%p239) target = $region32
        $region31: #{tpu_custom_call.1} parent=19 // pred_region
          %s242 = sand.u32 %s22, 1
          %s243 = scalar_lea.sflag [#allocation8], %s242
          %s244 = sand.u32 %s98, 1
          %s245 = smul.addr %s244, 256
          %s246 = scalar_lea.vmem [#allocation9], %s245
          %s248 = ssub.s32 4096, 4096
          %249 = vsyncadd %s243, %s248
          %s250 = smul.addr %s29, 32
          %s251 = smul.addr %s250, 128
          %s252 = scalar_lea.hbm %s3, %s251
          %s253 = sshll.u32 %s246, 4
          %s254 = int_to_ptr.vmem [resolvable:$true] %s253
          %259 = dma.hbm_to_vmem [thread:$0]  %s252, 4096, %s254, %s243, 128, 128, 8
        $region32: #{tpu_custom_call.1} parent=19 // pred_fallthru
          _
      $region20: #{tpu_custom_call.1} parent=5 // pred_fallthru
        _
      %p260 = scmp.le.s32.totalorder 1, %s22
      %p261 = scmp.lt.s32.totalorder %s22, 5
      %p262 = pnand %p260, %p261
      %p263 = pneg %p262
      // Predicated region
      $region33: #{tpu_custom_call.1} parent=5 // pred_check
        _
      $region34: #{tpu_custom_call.1} parent=5 // pred_check_branch
        %265 = sbr.rel (%p262) target = $region36
      $region35: #{tpu_custom_call.1} parent=5 // pred_region
        %s266 = ssub.s32 %s22, 1
        %s267 = sand.u32 %s49, 1
        %s268 = scalar_lea.sflag [#allocation5], %s267
        %s269 = sand.u32 %s49, 1
        %s270 = smul.addr %s269, 256
        %s271 = scalar_lea.vmem [#allocation4], %s270
        // Predicated region
        $region37: #{tpu_custom_call.1} parent=35 // pred_check
          %p272 = pneg %p62
        $region38: #{tpu_custom_call.1} parent=35 // pred_check_branch
          %274 = sbr.rel (%p272) target = $region40
        $region39: #{tpu_custom_call.1} parent=35 // pred_region
          %275 = dma.done %s268, 4096
        $region40: #{tpu_custom_call.1} parent=35 // pred_fallthru
          _
        %s276 = sand.u32 %s27, 1
        %s277 = scalar_lea.sflag [#allocation8], %s276
        %s278 = sand.u32 %s75, 1
        %s279 = smul.addr %s278, 256
        %s280 = scalar_lea.vmem [#allocation7], %s279
        // Predicated region
        $region41: #{tpu_custom_call.1} parent=35 // pred_check
          %p281 = pneg %p88
        $region42: #{tpu_custom_call.1} parent=35 // pred_check_branch
          %283 = sbr.rel (%p281) target = $region44
        $region43: #{tpu_custom_call.1} parent=35 // pred_region
          %284 = dma.done %s277, 4096
        $region44: #{tpu_custom_call.1} parent=35 // pred_fallthru
          _
        %s285 = sand.u32 %s27, 1
        %s286 = scalar_lea.sflag [#allocation8], %s285
        %s287 = sand.u32 %s101, 1
        %s288 = smul.addr %s287, 256
        %s289 = scalar_lea.vmem [#allocation9], %s288
        // Predicated region
        $region45: #{tpu_custom_call.1} parent=35 // pred_check
          %p290 = pneg %p114
        $region46: #{tpu_custom_call.1} parent=35 // pred_check_branch
          %292 = sbr.rel (%p290) target = $region48
        $region47: #{tpu_custom_call.1} parent=35 // pred_region
          %293 = dma.done %s286, 4096
        $region48: #{tpu_custom_call.1} parent=35 // pred_fallthru
          _
        // Predicated region
        $region49: #{tpu_custom_call.1} parent=35 // pred_check
          %p294 = pneg %p135
        $region50: #{tpu_custom_call.1} parent=35 // pred_check_branch
          %296 = sbr.rel (%p294) target = $region52
        $region51: #{tpu_custom_call.1} parent=35 // pred_region
          %297 = dma.done [#allocation11], 8192
        $region52: #{tpu_custom_call.1} parent=35 // pred_fallthru
          _
        %s298 = sand.u32 %s49, 1
        %s299 = scalar_lea.sflag [#allocation5], %s298
        %s300 = sand.u32 %s49, 1
        %s301 = smul.addr %s300, 256
        %s302 = scalar_lea.vmem [#allocation4], %s301
        %p303 = pneg %p62
        %p304 = pneg %p59
        %s305 = sand.u32 %s27, 1
        %s306 = scalar_lea.sflag [#allocation8], %s305
        %s307 = sand.u32 %s75, 1
        %s308 = smul.addr %s307, 256
        %s309 = scalar_lea.vmem [#allocation7], %s308
        %p310 = pneg %p88
        %p311 = pneg %p85
        %s312 = sand.u32 %s27, 1
        %s313 = scalar_lea.sflag [#allocation8], %s312
        %s314 = sand.u32 %s101, 1
        %s315 = smul.addr %s314, 256
        %s316 = scalar_lea.vmem [#allocation9], %s315
        %p317 = pneg %p114
        %p318 = pneg %p111
        %p319 = pneg %p135
        %p320 = pneg %p132
        %p321 = pneg %p163
        %p322 = pneg %p160
        %s323 = sand.u32 %s150, 1
        %s324 = scalar_lea.sflag [#allocation6], %s323
        %s325 = sand.u32 %s150, 1
        %s326 = smul.addr %s325, 256
        %s327 = scalar_lea.vmem [#allocation12], %s326
        %s328 = smul.u32 32, %s32
        %s329 = smul.u32 32, %s32
        %v331 = vld [vmem:[%s271] sm:$0xff]
        %v332 = vld [vmem:[%s271 + $0x8] sm:$0xff]
        %v333 = vld [vmem:[%s271 + $0x10] sm:$0xff]
        %v334 = vld [vmem:[%s271 + $0x18] sm:$0xff]
        %v335 = vld [vmem:[%s271 + $0x20] sm:$0xff]
        %v336 = vld [vmem:[%s271 + $0x28] sm:$0xff]
        %v337 = vld [vmem:[%s271 + $0x30] sm:$0xff]
        %v338 = vld [vmem:[%s271 + $0x38] sm:$0xff]
        %v339 = vld [vmem:[%s271 + $0x40] sm:$0xff]
        %v340 = vld [vmem:[%s271 + $0x48] sm:$0xff]
        %v341 = vld [vmem:[%s271 + $0x50] sm:$0xff]
        %v342 = vld [vmem:[%s271 + $0x58] sm:$0xff]
        %v343 = vld [vmem:[%s271 + $0x60] sm:$0xff]
        %v344 = vld [vmem:[%s271 + $0x68] sm:$0xff]
        %v345 = vld [vmem:[%s271 + $0x70] sm:$0xff]
        %v346 = vld [vmem:[%s271 + $0x78] sm:$0xff]
        %v347 = vld [vmem:[%s271 + $0x80] sm:$0xff]
        %v348 = vld [vmem:[%s271 + $0x88] sm:$0xff]
        %v349 = vld [vmem:[%s271 + $0x90] sm:$0xff]
        %v350 = vld [vmem:[%s271 + $0x98] sm:$0xff]
        %v351 = vld [vmem:[%s271 + $0xa0] sm:$0xff]
        %v352 = vld [vmem:[%s271 + $0xa8] sm:$0xff]
        %v353 = vld [vmem:[%s271 + $0xb0] sm:$0xff]
        %v354 = vld [vmem:[%s271 + $0xb8] sm:$0xff]
        %v355 = vld [vmem:[%s271 + $0xc0] sm:$0xff]
        %v356 = vld [vmem:[%s271 + $0xc8] sm:$0xff]
        %v357 = vld [vmem:[%s271 + $0xd0] sm:$0xff]
        %v358 = vld [vmem:[%s271 + $0xd8] sm:$0xff]
        %v359 = vld [vmem:[%s271 + $0xe0] sm:$0xff]
        %v360 = vld [vmem:[%s271 + $0xe8] sm:$0xff]
        %v361 = vld [vmem:[%s271 + $0xf0] sm:$0xff]
        %v362 = vld [vmem:[%s271 + $0xf8] sm:$0xff]
        %v363 = vmul.f32 %v331, 0.088388346
        %v364 = vmul.f32 %v332, 0.088388346
        %v365 = vmul.f32 %v333, 0.088388346
        %v366 = vmul.f32 %v334, 0.088388346
        %v367 = vmul.f32 %v335, 0.088388346
        %v368 = vmul.f32 %v336, 0.088388346
        %v369 = vmul.f32 %v337, 0.088388346
        %v370 = vmul.f32 %v338, 0.088388346
        %v371 = vmul.f32 %v339, 0.088388346
        %v372 = vmul.f32 %v340, 0.088388346
        %v373 = vmul.f32 %v341, 0.088388346
        %v374 = vmul.f32 %v342, 0.088388346
        %v375 = vmul.f32 %v343, 0.088388346
        %v376 = vmul.f32 %v344, 0.088388346
        %v377 = vmul.f32 %v345, 0.088388346
        %v378 = vmul.f32 %v346, 0.088388346
        %v379 = vmul.f32 %v347, 0.088388346
        %v380 = vmul.f32 %v348, 0.088388346
        %v381 = vmul.f32 %v349, 0.088388346
        %v382 = vmul.f32 %v350, 0.088388346
        %v383 = vmul.f32 %v351, 0.088388346
        %v384 = vmul.f32 %v352, 0.088388346
        %v385 = vmul.f32 %v353, 0.088388346
        %v386 = vmul.f32 %v354, 0.088388346
        %v387 = vmul.f32 %v355, 0.088388346
        %v388 = vmul.f32 %v356, 0.088388346
        %v389 = vmul.f32 %v357, 0.088388346
        %v390 = vmul.f32 %v358, 0.088388346
        %v391 = vmul.f32 %v359, 0.088388346
        %v392 = vmul.f32 %v360, 0.088388346
        %v393 = vmul.f32 %v361, 0.088388346
        %v394 = vmul.f32 %v362, 0.088388346
        %v395 = vpack.c.bf16 %v364, %v363
        %v396 = vpack.c.bf16 %v366, %v365
        %v397 = vpack.c.bf16 %v368, %v367
        %v398 = vpack.c.bf16 %v370, %v369
        %v399 = vpack.c.bf16 %v372, %v371
        %v400 = vpack.c.bf16 %v374, %v373
        %v401 = vpack.c.bf16 %v376, %v375
        %v402 = vpack.c.bf16 %v378, %v377
        %v403 = vpack.c.bf16 %v380, %v379
        %v404 = vpack.c.bf16 %v382, %v381
        %v405 = vpack.c.bf16 %v384, %v383
        %v406 = vpack.c.bf16 %v386, %v385
        %v407 = vpack.c.bf16 %v388, %v387
        %v408 = vpack.c.bf16 %v390, %v389
        %v409 = vpack.c.bf16 %v392, %v391
        %v410 = vpack.c.bf16 %v394, %v393
        %v411 = vld [vmem:[%s280] sm:$0xff]
        %v412 = vld [vmem:[%s280 + $0x8] sm:$0xff]
        %v413 = vld [vmem:[%s280 + $0x10] sm:$0xff]
        %v414 = vld [vmem:[%s280 + $0x18] sm:$0xff]
        %v415 = vld [vmem:[%s280 + $0x20] sm:$0xff]
        %v416 = vld [vmem:[%s280 + $0x28] sm:$0xff]
        %v417 = vld [vmem:[%s280 + $0x30] sm:$0xff]
        %v418 = vld [vmem:[%s280 + $0x38] sm:$0xff]
        %v419 = vld [vmem:[%s280 + $0x40] sm:$0xff]
        %v420 = vld [vmem:[%s280 + $0x48] sm:$0xff]
        %v421 = vld [vmem:[%s280 + $0x50] sm:$0xff]
        %v422 = vld [vmem:[%s280 + $0x58] sm:$0xff]
        %v423 = vld [vmem:[%s280 + $0x60] sm:$0xff]
        %v424 = vld [vmem:[%s280 + $0x68] sm:$0xff]
        %v425 = vld [vmem:[%s280 + $0x70] sm:$0xff]
        %v426 = vld [vmem:[%s280 + $0x78] sm:$0xff]
        %v427 = vld [vmem:[%s280 + $0x80] sm:$0xff]
        %v428 = vld [vmem:[%s280 + $0x88] sm:$0xff]
        %v429 = vld [vmem:[%s280 + $0x90] sm:$0xff]
        %v430 = vld [vmem:[%s280 + $0x98] sm:$0xff]
        %v431 = vld [vmem:[%s280 + $0xa0] sm:$0xff]
        %v432 = vld [vmem:[%s280 + $0xa8] sm:$0xff]
        %v433 = vld [vmem:[%s280 + $0xb0] sm:$0xff]
        %v434 = vld [vmem:[%s280 + $0xb8] sm:$0xff]
        %v435 = vld [vmem:[%s280 + $0xc0] sm:$0xff]
        %v436 = vld [vmem:[%s280 + $0xc8] sm:$0xff]
        %v437 = vld [vmem:[%s280 + $0xd0] sm:$0xff]
        %v438 = vld [vmem:[%s280 + $0xd8] sm:$0xff]
        %v439 = vld [vmem:[%s280 + $0xe0] sm:$0xff]
        %v440 = vld [vmem:[%s280 + $0xe8] sm:$0xff]
        %v441 = vld [vmem:[%s280 + $0xf0] sm:$0xff]
        %v442 = vld [vmem:[%s280 + $0xf8] sm:$0xff]
        %v443 = vpack.c.bf16 %v412, %v411
        %v444 = vpack.c.bf16 %v414, %v413
        %v445 = vpack.c.bf16 %v416, %v415
        %v446 = vpack.c.bf16 %v418, %v417
        %v447 = vpack.c.bf16 %v420, %v419
        %v448 = vpack.c.bf16 %v422, %v421
        %v449 = vpack.c.bf16 %v424, %v423
        %v450 = vpack.c.bf16 %v426, %v425
        %v451 = vpack.c.bf16 %v428, %v427
        %v452 = vpack.c.bf16 %v430, %v429
        %v453 = vpack.c.bf16 %v432, %v431
        %v454 = vpack.c.bf16 %v434, %v433
        %v455 = vpack.c.bf16 %v436, %v435
        %v456 = vpack.c.bf16 %v438, %v437
        %v457 = vpack.c.bf16 %v440, %v439
        %v458 = vpack.c.bf16 %v442, %v441
        %v459 = vld [vmem:[%s289] sm:$0xff]
        %v460 = vld [vmem:[%s289 + $0x8] sm:$0xff]
        %v461 = vld [vmem:[%s289 + $0x10] sm:$0xff]
        %v462 = vld [vmem:[%s289 + $0x18] sm:$0xff]
        %v463 = vld [vmem:[%s289 + $0x20] sm:$0xff]
        %v464 = vld [vmem:[%s289 + $0x28] sm:$0xff]
        %v465 = vld [vmem:[%s289 + $0x30] sm:$0xff]
        %v466 = vld [vmem:[%s289 + $0x38] sm:$0xff]
        %v467 = vld [vmem:[%s289 + $0x40] sm:$0xff]
        %v468 = vld [vmem:[%s289 + $0x48] sm:$0xff]
        %v469 = vld [vmem:[%s289 + $0x50] sm:$0xff]
        %v470 = vld [vmem:[%s289 + $0x58] sm:$0xff]
        %v471 = vld [vmem:[%s289 + $0x60] sm:$0xff]
        %v472 = vld [vmem:[%s289 + $0x68] sm:$0xff]
        %v473 = vld [vmem:[%s289 + $0x70] sm:$0xff]
        %v474 = vld [vmem:[%s289 + $0x78] sm:$0xff]
        %v475 = vld [vmem:[%s289 + $0x80] sm:$0xff]
        %v476 = vld [vmem:[%s289 + $0x88] sm:$0xff]
        %v477 = vld [vmem:[%s289 + $0x90] sm:$0xff]
        %v478 = vld [vmem:[%s289 + $0x98] sm:$0xff]
        %v479 = vld [vmem:[%s289 + $0xa0] sm:$0xff]
        %v480 = vld [vmem:[%s289 + $0xa8] sm:$0xff]
        %v481 = vld [vmem:[%s289 + $0xb0] sm:$0xff]
        %v482 = vld [vmem:[%s289 + $0xb8] sm:$0xff]
        %v483 = vld [vmem:[%s289 + $0xc0] sm:$0xff]
        %v484 = vld [vmem:[%s289 + $0xc8] sm:$0xff]
        %v485 = vld [vmem:[%s289 + $0xd0] sm:$0xff]
        %v486 = vld [vmem:[%s289 + $0xd8] sm:$0xff]
        %v487 = vld [vmem:[%s289 + $0xe0] sm:$0xff]
        %v488 = vld [vmem:[%s289 + $0xe8] sm:$0xff]
        %v489 = vld [vmem:[%s289 + $0xf0] sm:$0xff]
        %v490 = vld [vmem:[%s289 + $0xf8] sm:$0xff]
        %v491 = vpack.c.bf16 %v460, %v459
        %v492 = vpack.c.bf16 %v462, %v461
        %v493 = vpack.c.bf16 %v464, %v463
        %v494 = vpack.c.bf16 %v466, %v465
        %v495 = vpack.c.bf16 %v468, %v467
        %v496 = vpack.c.bf16 %v470, %v469
        %v497 = vpack.c.bf16 %v472, %v471
        %v498 = vpack.c.bf16 %v474, %v473
        %v499 = vpack.c.bf16 %v476, %v475
        %v500 = vpack.c.bf16 %v478, %v477
        %v501 = vpack.c.bf16 %v480, %v479
        %v502 = vpack.c.bf16 %v482, %v481
        %v503 = vpack.c.bf16 %v484, %v483
        %v504 = vpack.c.bf16 %v486, %v485
        %v505 = vpack.c.bf16 %v488, %v487
        %v506 = vpack.c.bf16 %v490, %v489
        %s507 = smul.u32 %s32, 256
        %s508 = sshra.s32 %s507, 3
        %s509 = sand.u32 %s507, 7
        %s510 = smul.u32 %s508, 2
        %s511 = smul.addr %s510, 8
        %s512 = scalar_lea.vmem [#allocation10], %s511
        %v513 = vld [vmem:[%s512] sm:$0xff]
        %v514 = vld [vmem:[%s512 + $0x8] sm:$0xff]
        %v515 = vld [vmem:[%s512 + $0x10] sm:$0xff]
        %v516 = vld [vmem:[%s512 + $0x18] sm:$0xff]
        %v517 = vld [vmem:[%s512 + $0x20] sm:$0xff]
        %v518 = vld [vmem:[%s512 + $0x28] sm:$0xff]
        %v519 = vld [vmem:[%s512 + $0x30] sm:$0xff]
        %v520 = vld [vmem:[%s512 + $0x38] sm:$0xff]
        %v521 = vld [vmem:[%s512 + $0x40] sm:$0xff]
        %v522 = vld [vmem:[%s512 + $0x48] sm:$0xff]
        %v523 = vld [vmem:[%s512 + $0x50] sm:$0xff]
        %v524 = vld [vmem:[%s512 + $0x58] sm:$0xff]
        %v525 = vld [vmem:[%s512 + $0x60] sm:$0xff]
        %v526 = vld [vmem:[%s512 + $0x68] sm:$0xff]
        %v527 = vld [vmem:[%s512 + $0x70] sm:$0xff]
        %v528 = vld [vmem:[%s512 + $0x78] sm:$0xff]
        %v529 = vld [vmem:[%s512 + $0x80] sm:$0xff]
        %v530 = vld [vmem:[%s512 + $0x88] sm:$0xff]
        %v531 = vld [vmem:[%s512 + $0x90] sm:$0xff]
        %v532 = vld [vmem:[%s512 + $0x98] sm:$0xff]
        %v533 = vld [vmem:[%s512 + $0xa0] sm:$0xff]
        %v534 = vld [vmem:[%s512 + $0xa8] sm:$0xff]
        %v535 = vld [vmem:[%s512 + $0xb0] sm:$0xff]
        %v536 = vld [vmem:[%s512 + $0xb8] sm:$0xff]
        %v537 = vld [vmem:[%s512 + $0xc0] sm:$0xff]
        %v538 = vld [vmem:[%s512 + $0xc8] sm:$0xff]
        %v539 = vld [vmem:[%s512 + $0xd0] sm:$0xff]
        %v540 = vld [vmem:[%s512 + $0xd8] sm:$0xff]
        %v541 = vld [vmem:[%s512 + $0xe0] sm:$0xff]
        %v542 = vld [vmem:[%s512 + $0xe8] sm:$0xff]
        %v543 = vld [vmem:[%s512 + $0xf0] sm:$0xff]
        %v544 = vld [vmem:[%s512 + $0xf8] sm:$0xff]
        %v545 = vld [vmem:[%s512 + $0x100] sm:$0xff]
        %v546 = vld [vmem:[%s512 + $0x108] sm:$0xff]
        %v547 = vld [vmem:[%s512 + $0x110] sm:$0xff]
        %v548 = vld [vmem:[%s512 + $0x118] sm:$0xff]
        %v549 = vld [vmem:[%s512 + $0x120] sm:$0xff]
        %v550 = vld [vmem:[%s512 + $0x128] sm:$0xff]
        %v551 = vld [vmem:[%s512 + $0x130] sm:$0xff]
        %v552 = vld [vmem:[%s512 + $0x138] sm:$0xff]
        %v553 = vld [vmem:[%s512 + $0x140] sm:$0xff]
        %v554 = vld [vmem:[%s512 + $0x148] sm:$0xff]
        %v555 = vld [vmem:[%s512 + $0x150] sm:$0xff]
        %v556 = vld [vmem:[%s512 + $0x158] sm:$0xff]
        %v557 = vld [vmem:[%s512 + $0x160] sm:$0xff]
        %v558 = vld [vmem:[%s512 + $0x168] sm:$0xff]
        %v559 = vld [vmem:[%s512 + $0x170] sm:$0xff]
        %v560 = vld [vmem:[%s512 + $0x178] sm:$0xff]
        %v561 = vld [vmem:[%s512 + $0x180] sm:$0xff]
        %v562 = vld [vmem:[%s512 + $0x188] sm:$0xff]
        %v563 = vld [vmem:[%s512 + $0x190] sm:$0xff]
        %v564 = vld [vmem:[%s512 + $0x198] sm:$0xff]
        %v565 = vld [vmem:[%s512 + $0x1a0] sm:$0xff]
        %v566 = vld [vmem:[%s512 + $0x1a8] sm:$0xff]
        %v567 = vld [vmem:[%s512 + $0x1b0] sm:$0xff]
        %v568 = vld [vmem:[%s512 + $0x1b8] sm:$0xff]
        %v569 = vld [vmem:[%s512 + $0x1c0] sm:$0xff]
        %v570 = vld [vmem:[%s512 + $0x1c8] sm:$0xff]
        %v571 = vld [vmem:[%s512 + $0x1d0] sm:$0xff]
        %v572 = vld [vmem:[%s512 + $0x1d8] sm:$0xff]
        %v573 = vld [vmem:[%s512 + $0x1e0] sm:$0xff]
        %v574 = vld [vmem:[%s512 + $0x1e8] sm:$0xff]
        %v575 = vld [vmem:[%s512 + $0x1f0] sm:$0xff]
        %v576 = vld [vmem:[%s512 + $0x1f8] sm:$0xff]
        %577 = vmatprep.subr.bf16.mxu0 0
        %578 = vmatpush1.bf16.xpose.msra.mxu0 %v443
        %579 = vmatprep.subr.bf16.mxu0 0
        %580 = vmatpush1.bf16.xpose.msra.mxu0 %v444
        %581 = vmatprep.subr.bf16.mxu0 0
        %582 = vmatpush1.bf16.xpose.msra.mxu0 %v445
        %583 = vmatprep.subr.bf16.mxu0 0
        %584 = vmatpush1.bf16.xpose.msra.mxu0 %v446
        %585 = vmatprep.subr.bf16.mxu0 0
        %586 = vmatpush1.bf16.xpose.msra.mxu0 %v447
        %587 = vmatprep.subr.bf16.mxu0 0
        %588 = vmatpush1.bf16.xpose.msra.mxu0 %v448
        %589 = vmatprep.subr.bf16.mxu0 0
        %590 = vmatpush1.bf16.xpose.msra.mxu0 %v449
        %591 = vmatprep.subr.bf16.mxu0 0
        %592 = vmatpush1.bf16.xpose.msra.mxu0 %v450
        %593 = vmatprep.subr.bf16.mxu0 0
        %594 = vmatpush1.bf16.xpose.msra.mxu0 %v451
        %595 = vmatprep.subr.bf16.mxu0 0
        %596 = vmatpush1.bf16.xpose.msra.mxu0 %v452
        %597 = vmatprep.subr.bf16.mxu0 0
        %598 = vmatpush1.bf16.xpose.msra.mxu0 %v453
        %599 = vmatprep.subr.bf16.mxu0 0
        %600 = vmatpush1.bf16.xpose.msra.mxu0 %v454
        %601 = vmatprep.subr.bf16.mxu0 0
        %602 = vmatpush1.bf16.xpose.msra.mxu0 %v455
        %603 = vmatprep.subr.bf16.mxu0 0
        %604 = vmatpush1.bf16.xpose.msra.mxu0 %v456
        %605 = vmatprep.subr.bf16.mxu0 0
        %606 = vmatpush1.bf16.xpose.msra.mxu0 %v457
        %607 = vmatprep.subr.bf16.mxu0 0
        %608 = vmatpush1.bf16.xpose.msra.mxu0 %v458
        %609 = vmatprep.mubr.bf16.mxu0 0
        %610 = vmatmul.mubr.bf16.gmra.mrb[0].mxu0 %v395
        %v611 = vpop.f32.mrb[0].mxu0
        %v612 = vadd.f32 %v513, %v611
        %v613 = vpop.f32.mrb[0].mxu0
        %v614 = vadd.f32 %v514, %v613
        %v615 = vpop.f32.mrb[0].mxu0
        %v616 = vadd.f32 %v515, %v615
        %v617 = vpop.f32.mrb[0].mxu0
        %v618 = vadd.f32 %v516, %v617
        %619 = vmatprep.mubr.bf16.mxu0 0
        %620 = vmatmul.mubr.bf16.gmra.mrb[0].mxu0 %v396
        %v621 = vpop.f32.mrb[0].mxu0
        %v622 = vadd.f32 %v517, %v621
        %v623 = vpop.f32.mrb[0].mxu0
        %v624 = vadd.f32 %v518, %v623
        %v625 = vpop.f32.mrb[0].mxu0
        %v626 = vadd.f32 %v519, %v625
        %v627 = vpop.f32.mrb[0].mxu0
        %v628 = vadd.f32 %v520, %v627
        %629 = vmatprep.mubr.bf16.mxu0 0
        %630 = vmatmul.mubr.bf16.gmra.mrb[0].mxu0 %v397
        %v631 = vpop.f32.mrb[0].mxu0
        %v632 = vadd.f32 %v521, %v631
        %v633 = vpop.f32.mrb[0].mxu0
        %v634 = vadd.f32 %v522, %v633
        %v635 = vpop.f32.mrb[0].mxu0
        %v636 = vadd.f32 %v523, %v635
        %v637 = vpop.f32.mrb[0].mxu0
        %v638 = vadd.f32 %v524, %v637
        %639 = vmatprep.mubr.bf16.mxu0 0
        %640 = vmatmul.mubr.bf16.gmra.mrb[0].mxu0 %v398
        %v641 = vpop.f32.mrb[0].mxu0
        %v642 = vadd.f32 %v525, %v641
        %v643 = vpop.f32.mrb[0].mxu0
        %v644 = vadd.f32 %v526, %v643
        %v645 = vpop.f32.mrb[0].mxu0
        %v646 = vadd.f32 %v527, %v645
        %v647 = vpop.f32.mrb[0].mxu0
        %v648 = vadd.f32 %v528, %v647
        %649 = vmatprep.mubr.bf16.mxu0 0
        %650 = vmatmul.mubr.bf16.gmra.mrb[0].mxu0 %v399
        %v651 = vpop.f32.mrb[0].mxu0
        %v652 = vadd.f32 %v529, %v651
        %v653 = vpop.f32.mrb[0].mxu0
        %v654 = vadd.f32 %v530, %v653
        %v655 = vpop.f32.mrb[0].mxu0
        %v656 = vadd.f32 %v531, %v655
        %v657 = vpop.f32.mrb[0].mxu0
        %v658 = vadd.f32 %v532, %v657
        %659 = vmatprep.mubr.bf16.mxu0 0
        %660 = vmatmul.mubr.bf16.gmra.mrb[0].mxu0 %v400
        %v661 = vpop.f32.mrb[0].mxu0
        %v662 = vadd.f32 %v533, %v661
        %v663 = vpop.f32.mrb[0].mxu0
        %v664 = vadd.f32 %v534, %v663
        %v665 = vpop.f32.mrb[0].mxu0
        %v666 = vadd.f32 %v535, %v665
        %v667 = vpop.f32.mrb[0].mxu0
        %v668 = vadd.f32 %v536, %v667
        %669 = vmatprep.mubr.bf16.mxu0 0
        %670 = vmatmul.mubr.bf16.gmra.mrb[0].mxu0 %v401
        %v671 = vpop.f32.mrb[0].mxu0
        %v672 = vadd.f32 %v537, %v671
        %v673 = vpop.f32.mrb[0].mxu0
        %v674 = vadd.f32 %v538, %v673
        %v675 = vpop.f32.mrb[0].mxu0
        %v676 = vadd.f32 %v539, %v675
        %v677 = vpop.f32.mrb[0].mxu0
        %v678 = vadd.f32 %v540, %v677
        %679 = vmatprep.mubr.bf16.mxu0 0
        %680 = vmatmul.mubr.bf16.gmra.mrb[0].mxu0 %v402
        %v681 = vpop.f32.mrb[0].mxu0
        %v682 = vadd.f32 %v541, %v681
        %v683 = vpop.f32.mrb[0].mxu0
        %v684 = vadd.f32 %v542, %v683
        %v685 = vpop.f32.mrb[0].mxu0
        %v686 = vadd.f32 %v543, %v685
        %v687 = vpop.f32.mrb[0].mxu0
        %v688 = vadd.f32 %v544, %v687
        %689 = vmatprep.mubr.bf16.mxu0 0
        %690 = vmatmul.mubr.bf16.gmra.mrb[0].mxu0 %v403
        %v691 = vpop.f32.mrb[0].mxu0
        %v692 = vadd.f32 %v545, %v691
        %v693 = vpop.f32.mrb[0].mxu0
        %v694 = vadd.f32 %v546, %v693
        %v695 = vpop.f32.mrb[0].mxu0
        %v696 = vadd.f32 %v547, %v695
        %v697 = vpop.f32.mrb[0].mxu0
        %v698 = vadd.f32 %v548, %v697
        %699 = vmatprep.mubr.bf16.mxu0 0
        %700 = vmatmul.mubr.bf16.gmra.mrb[0].mxu0 %v404
        %v701 = vpop.f32.mrb[0].mxu0
        %v702 = vadd.f32 %v549, %v701
        %v703 = vpop.f32.mrb[0].mxu0
        %v704 = vadd.f32 %v550, %v703
        %v705 = vpop.f32.mrb[0].mxu0
        %v706 = vadd.f32 %v551, %v705
        %v707 = vpop.f32.mrb[0].mxu0
        %v708 = vadd.f32 %v552, %v707
        %709 = vmatprep.mubr.bf16.mxu0 0
        %710 = vmatmul.mubr.bf16.gmra.mrb[0].mxu0 %v405
        %v711 = vpop.f32.mrb[0].mxu0
        %v712 = vadd.f32 %v553, %v711
        %v713 = vpop.f32.mrb[0].mxu0
        %v714 = vadd.f32 %v554, %v713
        %v715 = vpop.f32.mrb[0].mxu0
        %v716 = vadd.f32 %v555, %v715
        %v717 = vpop.f32.mrb[0].mxu0
        %v718 = vadd.f32 %v556, %v717
        %719 = vmatprep.mubr.bf16.mxu0 0
        %720 = vmatmul.mubr.bf16.gmra.mrb[0].mxu0 %v406
        %v721 = vpop.f32.mrb[0].mxu0
        %v722 = vadd.f32 %v557, %v721
        %v723 = vpop.f32.mrb[0].mxu0
        %v724 = vadd.f32 %v558, %v723
        %v725 = vpop.f32.mrb[0].mxu0
        %v726 = vadd.f32 %v559, %v725
        %v727 = vpop.f32.mrb[0].mxu0
        %v728 = vadd.f32 %v560, %v727
        %729 = vmatprep.mubr.bf16.mxu0 0
        %730 = vmatmul.mubr.bf16.gmra.mrb[0].mxu0 %v407
        %v731 = vpop.f32.mrb[0].mxu0
        %v732 = vadd.f32 %v561, %v731
        %v733 = vpop.f32.mrb[0].mxu0
        %v734 = vadd.f32 %v562, %v733
        %v735 = vpop.f32.mrb[0].mxu0
        %v736 = vadd.f32 %v563, %v735
        %v737 = vpop.f32.mrb[0].mxu0
        %v738 = vadd.f32 %v564, %v737
        %739 = vmatprep.mubr.bf16.mxu0 0
        %740 = vmatmul.mubr.bf16.gmra.mrb[0].mxu0 %v408
        %v741 = vpop.f32.mrb[0].mxu0
        %v742 = vadd.f32 %v565, %v741
        %v743 = vpop.f32.mrb[0].mxu0
        %v744 = vadd.f32 %v566, %v743
        %v745 = vpop.f32.mrb[0].mxu0
        %v746 = vadd.f32 %v567, %v745
        %v747 = vpop.f32.mrb[0].mxu0
        %v748 = vadd.f32 %v568, %v747
        %749 = vmatprep.mubr.bf16.mxu0 0
        %750 = vmatmul.mubr.bf16.gmra.mrb[0].mxu0 %v409
        %v751 = vpop.f32.mrb[0].mxu0
        %v752 = vadd.f32 %v569, %v751
        %v753 = vpop.f32.mrb[0].mxu0
        %v754 = vadd.f32 %v570, %v753
        %v755 = vpop.f32.mrb[0].mxu0
        %v756 = vadd.f32 %v571, %v755
        %v757 = vpop.f32.mrb[0].mxu0
        %v758 = vadd.f32 %v572, %v757
        %759 = vmatprep.mubr.bf16.mxu0 0
        %760 = vmatmul.mubr.bf16.gmra.mrb[0].mxu0 %v410
        %v761 = vpop.f32.mrb[0].mxu0
        %v762 = vadd.f32 %v573, %v761
        %v763 = vpop.f32.mrb[0].mxu0
        %v764 = vadd.f32 %v574, %v763
        %v765 = vpop.f32.mrb[0].mxu0
        %v766 = vadd.f32 %v575, %v765
        %v767 = vpop.f32.mrb[0].mxu0
        %v768 = vadd.f32 %v576, %v767
        %769 = vdwg.mxu0
        %v770 = vmax.f32 %v612, %v614
        %771 = vmax.xlane.f32.xlu0 %v770
        %v772 = vpop.xlane.xlu0 %771
        %v773 = vmax.f32 %v616, %v618
        %774 = vmax.xlane.f32.xlu0 %v773
        %v775 = vpop.xlane.xlu0 %774
        %v776 = vmax.f32 %v622, %v624
        %777 = vmax.xlane.f32.xlu0 %v776
        %v778 = vpop.xlane.xlu0 %777
        %v779 = vmax.f32 %v626, %v628
        %780 = vmax.xlane.f32.xlu0 %v779
        %v781 = vpop.xlane.xlu0 %780
        %v782 = vmax.f32 %v632, %v634
        %783 = vmax.xlane.f32.xlu0 %v782
        %v784 = vpop.xlane.xlu0 %783
        %v785 = vmax.f32 %v636, %v638
        %786 = vmax.xlane.f32.xlu0 %v785
        %v787 = vpop.xlane.xlu0 %786
        %v788 = vmax.f32 %v642, %v644
        %789 = vmax.xlane.f32.xlu0 %v788
        %v790 = vpop.xlane.xlu0 %789
        %v791 = vmax.f32 %v646, %v648
        %792 = vmax.xlane.f32.xlu0 %v791
        %v793 = vpop.xlane.xlu0 %792
        %v794 = vmax.f32 %v652, %v654
        %795 = vmax.xlane.f32.xlu0 %v794
        %v796 = vpop.xlane.xlu0 %795
        %v797 = vmax.f32 %v656, %v658
        %798 = vmax.xlane.f32.xlu0 %v797
        %v799 = vpop.xlane.xlu0 %798
        %v800 = vmax.f32 %v662, %v664
        %801 = vmax.xlane.f32.xlu0 %v800
        %v802 = vpop.xlane.xlu0 %801
        %v803 = vmax.f32 %v666, %v668
        %804 = vmax.xlane.f32.xlu0 %v803
        %v805 = vpop.xlane.xlu0 %804
        %v806 = vmax.f32 %v672, %v674
        %807 = vmax.xlane.f32.xlu0 %v806
        %v808 = vpop.xlane.xlu0 %807
        %v809 = vmax.f32 %v676, %v678
        %810 = vmax.xlane.f32.xlu0 %v809
        %v811 = vpop.xlane.xlu0 %810
        %v812 = vmax.f32 %v682, %v684
        %813 = vmax.xlane.f32.xlu0 %v812
        %v814 = vpop.xlane.xlu0 %813
        %v815 = vmax.f32 %v686, %v688
        %816 = vmax.xlane.f32.xlu0 %v815
        %v817 = vpop.xlane.xlu0 %816
        %v818 = vmax.f32 %v692, %v694
        %819 = vmax.xlane.f32.xlu0 %v818
        %v820 = vpop.xlane.xlu0 %819
        %v821 = vmax.f32 %v696, %v698
        %822 = vmax.xlane.f32.xlu0 %v821
        %v823 = vpop.xlane.xlu0 %822
        %v824 = vmax.f32 %v702, %v704
        %825 = vmax.xlane.f32.xlu0 %v824
        %v826 = vpop.xlane.xlu0 %825
        %v827 = vmax.f32 %v706, %v708
        %828 = vmax.xlane.f32.xlu0 %v827
        %v829 = vpop.xlane.xlu0 %828
        %v830 = vmax.f32 %v712, %v714
        %831 = vmax.xlane.f32.xlu0 %v830
        %v832 = vpop.xlane.xlu0 %831
        %v833 = vmax.f32 %v716, %v718
        %834 = vmax.xlane.f32.xlu0 %v833
        %v835 = vpop.xlane.xlu0 %834
        %v836 = vmax.f32 %v722, %v724
        %837 = vmax.xlane.f32.xlu0 %v836
        %v838 = vpop.xlane.xlu0 %837
        %v839 = vmax.f32 %v726, %v728
        %840 = vmax.xlane.f32.xlu0 %v839
        %v841 = vpop.xlane.xlu0 %840
        %v842 = vmax.f32 %v732, %v734
        %843 = vmax.xlane.f32.xlu0 %v842
        %v844 = vpop.xlane.xlu0 %843
        %v845 = vmax.f32 %v736, %v738
        %846 = vmax.xlane.f32.xlu0 %v845
        %v847 = vpop.xlane.xlu0 %846
        %v848 = vmax.f32 %v742, %v744
        %849 = vmax.xlane.f32.xlu0 %v848
        %v850 = vpop.xlane.xlu0 %849
        %v851 = vmax.f32 %v746, %v748
        %852 = vmax.xlane.f32.xlu0 %v851
        %v853 = vpop.xlane.xlu0 %852
        %v854 = vmax.f32 %v752, %v754
        %855 = vmax.xlane.f32.xlu0 %v854
        %v856 = vpop.xlane.xlu0 %855
        %v857 = vmax.f32 %v756, %v758
        %858 = vmax.xlane.f32.xlu0 %v857
        %v859 = vpop.xlane.xlu0 %858
        %v860 = vmax.f32 %v762, %v764
        %861 = vmax.xlane.f32.xlu0 %v860
        %v862 = vpop.xlane.xlu0 %861
        %v863 = vmax.f32 %v766, %v768
        %864 = vmax.xlane.f32.xlu0 %v863
        %v865 = vpop.xlane.xlu0 %864
        %v866 = vsub.f32 %v612, %v772
        %v867 = vsub.f32 %v614, %v772
        %v868 = vsub.f32 %v616, %v775
        %v869 = vsub.f32 %v618, %v775
        %v870 = vsub.f32 %v622, %v778
        %v871 = vsub.f32 %v624, %v778
        %v872 = vsub.f32 %v626, %v781
        %v873 = vsub.f32 %v628, %v781
        %v874 = vsub.f32 %v632, %v784
        %v875 = vsub.f32 %v634, %v784
        %v876 = vsub.f32 %v636, %v787
        %v877 = vsub.f32 %v638, %v787
        %v878 = vsub.f32 %v642, %v790
        %v879 = vsub.f32 %v644, %v790
        %v880 = vsub.f32 %v646, %v793
        %v881 = vsub.f32 %v648, %v793
        %v882 = vsub.f32 %v652, %v796
        %v883 = vsub.f32 %v654, %v796
        %v884 = vsub.f32 %v656, %v799
        %v885 = vsub.f32 %v658, %v799
        %v886 = vsub.f32 %v662, %v802
        %v887 = vsub.f32 %v664, %v802
        %v888 = vsub.f32 %v666, %v805
        %v889 = vsub.f32 %v668, %v805
        %v890 = vsub.f32 %v672, %v808
        %v891 = vsub.f32 %v674, %v808
        %v892 = vsub.f32 %v676, %v811
        %v893 = vsub.f32 %v678, %v811
        %v894 = vsub.f32 %v682, %v814
        %v895 = vsub.f32 %v684, %v814
        %v896 = vsub.f32 %v686, %v817
        %v897 = vsub.f32 %v688, %v817
        %v898 = vsub.f32 %v692, %v820
        %v899 = vsub.f32 %v694, %v820
        %v900 = vsub.f32 %v696, %v823
        %v901 = vsub.f32 %v698, %v823
        %v902 = vsub.f32 %v702, %v826
        %v903 = vsub.f32 %v704, %v826
        %v904 = vsub.f32 %v706, %v829
        %v905 = vsub.f32 %v708, %v829
        %v906 = vsub.f32 %v712, %v832
        %v907 = vsub.f32 %v714, %v832
        %v908 = vsub.f32 %v716, %v835
        %v909 = vsub.f32 %v718, %v835
        %v910 = vsub.f32 %v722, %v838
        %v911 = vsub.f32 %v724, %v838
        %v912 = vsub.f32 %v726, %v841
        %v913 = vsub.f32 %v728, %v841
        %v914 = vsub.f32 %v732, %v844
        %v915 = vsub.f32 %v734, %v844
        %v916 = vsub.f32 %v736, %v847
        %v917 = vsub.f32 %v738, %v847
        %v918 = vsub.f32 %v742, %v850
        %v919 = vsub.f32 %v744, %v850
        %v920 = vsub.f32 %v746, %v853
        %v921 = vsub.f32 %v748, %v853
        %v922 = vsub.f32 %v752, %v856
        %v923 = vsub.f32 %v754, %v856
        %v924 = vsub.f32 %v756, %v859
        %v925 = vsub.f32 %v758, %v859
        %v926 = vsub.f32 %v762, %v862
        %v927 = vsub.f32 %v764, %v862
        %v928 = vsub.f32 %v766, %v865
        %v929 = vsub.f32 %v768, %v865
        %v930 = vmul.f32 %v866, 1.442695
        %v931 = vpow.pop %v930
        %v932 = vmul.f32 %v867, 1.442695
        %v933 = vpow.pop %v932
        %v934 = vmul.f32 %v868, 1.442695
        %v935 = vpow.pop %v934
        %v936 = vmul.f32 %v869, 1.442695
        %v937 = vpow.pop %v936
        %v938 = vmul.f32 %v870, 1.442695
        %v939 = vpow.pop %v938
        %v940 = vmul.f32 %v871, 1.442695
        %v941 = vpow.pop %v940
        %v942 = vmul.f32 %v872, 1.442695
        %v943 = vpow.pop %v942
        %v944 = vmul.f32 %v873, 1.442695
        %v945 = vpow.pop %v944
        %v946 = vmul.f32 %v874, 1.442695
        %v947 = vpow.pop %v946
        %v948 = vmul.f32 %v875, 1.442695
        %v949 = vpow.pop %v948
        %v950 = vmul.f32 %v876, 1.442695
        %v951 = vpow.pop %v950
        %v952 = vmul.f32 %v877, 1.442695
        %v953 = vpow.pop %v952
        %v954 = vmul.f32 %v878, 1.442695
        %v955 = vpow.pop %v954
        %v956 = vmul.f32 %v879, 1.442695
        %v957 = vpow.pop %v956
        %v958 = vmul.f32 %v880, 1.442695
        %v959 = vpow.pop %v958
        %v960 = vmul.f32 %v881, 1.442695
        %v961 = vpow.pop %v960
        %v962 = vmul.f32 %v882, 1.442695
        %v963 = vpow.pop %v962
        %v964 = vmul.f32 %v883, 1.442695
        %v965 = vpow.pop %v964
        %v966 = vmul.f32 %v884, 1.442695
        %v967 = vpow.pop %v966
        %v968 = vmul.f32 %v885, 1.442695
        %v969 = vpow.pop %v968
        %v970 = vmul.f32 %v886, 1.442695
        %v971 = vpow.pop %v970
        %v972 = vmul.f32 %v887, 1.442695
        %v973 = vpow.pop %v972
        %v974 = vmul.f32 %v888, 1.442695
        %v975 = vpow.pop %v974
        %v976 = vmul.f32 %v889, 1.442695
        %v977 = vpow.pop %v976
        %v978 = vmul.f32 %v890, 1.442695
        %v979 = vpow.pop %v978
        %v980 = vmul.f32 %v891, 1.442695
        %v981 = vpow.pop %v980
        %v982 = vmul.f32 %v892, 1.442695
        %v983 = vpow.pop %v982
        %v984 = vmul.f32 %v893, 1.442695
        %v985 = vpow.pop %v984
        %v986 = vmul.f32 %v894, 1.442695
        %v987 = vpow.pop %v986
        %v988 = vmul.f32 %v895, 1.442695
        %v989 = vpow.pop %v988
        %v990 = vmul.f32 %v896, 1.442695
        %v991 = vpow.pop %v990
        %v992 = vmul.f32 %v897, 1.442695
        %v993 = vpow.pop %v992
        %v994 = vmul.f32 %v898, 1.442695
        %v995 = vpow.pop %v994
        %v996 = vmul.f32 %v899, 1.442695
        %v997 = vpow.pop %v996
        %v998 = vmul.f32 %v900, 1.442695
        %v999 = vpow.pop %v998
        %v1000 = vmul.f32 %v901, 1.442695
        %v1001 = vpow.pop %v1000
        %v1002 = vmul.f32 %v902, 1.442695
        %v1003 = vpow.pop %v1002
        %v1004 = vmul.f32 %v903, 1.442695
        %v1005 = vpow.pop %v1004
        %v1006 = vmul.f32 %v904, 1.442695
        %v1007 = vpow.pop %v1006
        %v1008 = vmul.f32 %v905, 1.442695
        %v1009 = vpow.pop %v1008
        %v1010 = vmul.f32 %v906, 1.442695
        %v1011 = vpow.pop %v1010
        %v1012 = vmul.f32 %v907, 1.442695
        %v1013 = vpow.pop %v1012
        %v1014 = vmul.f32 %v908, 1.442695
        %v1015 = vpow.pop %v1014
        %v1016 = vmul.f32 %v909, 1.442695
        %v1017 = vpow.pop %v1016
        %v1018 = vmul.f32 %v910, 1.442695
        %v1019 = vpow.pop %v1018
        %v1020 = vmul.f32 %v911, 1.442695
        %v1021 = vpow.pop %v1020
        %v1022 = vmul.f32 %v912, 1.442695
        %v1023 = vpow.pop %v1022
        %v1024 = vmul.f32 %v913, 1.442695
        %v1025 = vpow.pop %v1024
        %v1026 = vmul.f32 %v914, 1.442695
        %v1027 = vpow.pop %v1026
        %v1028 = vmul.f32 %v915, 1.442695
        %v1029 = vpow.pop %v1028
        %v1030 = vmul.f32 %v916, 1.442695
        %v1031 = vpow.pop %v1030
        %v1032 = vmul.f32 %v917, 1.442695
        %v1033 = vpow.pop %v1032
        %v1034 = vmul.f32 %v918, 1.442695
        %v1035 = vpow.pop %v1034
        %v1036 = vmul.f32 %v919, 1.442695
        %v1037 = vpow.pop %v1036
        %v1038 = vmul.f32 %v920, 1.442695
        %v1039 = vpow.pop %v1038
        %v1040 = vmul.f32 %v921, 1.442695
        %v1041 = vpow.pop %v1040
        %v1042 = vmul.f32 %v922, 1.442695
        %v1043 = vpow.pop %v1042
        %v1044 = vmul.f32 %v923, 1.442695
        %v1045 = vpow.pop %v1044
        %v1046 = vmul.f32 %v924, 1.442695
        %v1047 = vpow.pop %v1046
        %v1048 = vmul.f32 %v925, 1.442695
        %v1049 = vpow.pop %v1048
        %v1050 = vmul.f32 %v926, 1.442695
        %v1051 = vpow.pop %v1050
        %v1052 = vmul.f32 %v927, 1.442695
        %v1053 = vpow.pop %v1052
        %v1054 = vmul.f32 %v928, 1.442695
        %v1055 = vpow.pop %v1054
        %v1056 = vmul.f32 %v929, 1.442695
        %v1057 = vpow.pop %v1056
        %v1058 = vadd.f32 %v931, %v933
        %1059 = vadd.xlane.f32.xlu0 %v1058
        %v1060 = vpop.xlane.xlu0 %1059
        %v1061 = vadd.f32 %v935, %v937
        %1062 = vadd.xlane.f32.xlu0 %v1061
        %v1063 = vpop.xlane.xlu0 %1062
        %v1064 = vadd.f32 %v939, %v941
        %1065 = vadd.xlane.f32.xlu0 %v1064
        %v1066 = vpop.xlane.xlu0 %1065
        %v1067 = vadd.f32 %v943, %v945
        %1068 = vadd.xlane.f32.xlu0 %v1067
        %v1069 = vpop.xlane.xlu0 %1068
        %v1070 = vadd.f32 %v947, %v949
        %1071 = vadd.xlane.f32.xlu0 %v1070
        %v1072 = vpop.xlane.xlu0 %1071
        %v1073 = vadd.f32 %v951, %v953
        %1074 = vadd.xlane.f32.xlu0 %v1073
        %v1075 = vpop.xlane.xlu0 %1074
        %v1076 = vadd.f32 %v955, %v957
        %1077 = vadd.xlane.f32.xlu0 %v1076
        %v1078 = vpop.xlane.xlu0 %1077
        %v1079 = vadd.f32 %v959, %v961
        %1080 = vadd.xlane.f32.xlu0 %v1079
        %v1081 = vpop.xlane.xlu0 %1080
        %v1082 = vadd.f32 %v963, %v965
        %1083 = vadd.xlane.f32.xlu0 %v1082
        %v1084 = vpop.xlane.xlu0 %1083
        %v1085 = vadd.f32 %v967, %v969
        %1086 = vadd.xlane.f32.xlu0 %v1085
        %v1087 = vpop.xlane.xlu0 %1086
        %v1088 = vadd.f32 %v971, %v973
        %1089 = vadd.xlane.f32.xlu0 %v1088
        %v1090 = vpop.xlane.xlu0 %1089
        %v1091 = vadd.f32 %v975, %v977
        %1092 = vadd.xlane.f32.xlu0 %v1091
        %v1093 = vpop.xlane.xlu0 %1092
        %v1094 = vadd.f32 %v979, %v981
        %1095 = vadd.xlane.f32.xlu0 %v1094
        %v1096 = vpop.xlane.xlu0 %1095
        %v1097 = vadd.f32 %v983, %v985
        %1098 = vadd.xlane.f32.xlu0 %v1097
        %v1099 = vpop.xlane.xlu0 %1098
        %v1100 = vadd.f32 %v987, %v989
        %1101 = vadd.xlane.f32.xlu0 %v1100
        %v1102 = vpop.xlane.xlu0 %1101
        %v1103 = vadd.f32 %v991, %v993
        %1104 = vadd.xlane.f32.xlu0 %v1103
        %v1105 = vpop.xlane.xlu0 %1104
        %v1106 = vadd.f32 %v995, %v997
        %1107 = vadd.xlane.f32.xlu0 %v1106
        %v1108 = vpop.xlane.xlu0 %1107
        %v1109 = vadd.f32 %v999, %v1001
        %1110 = vadd.xlane.f32.xlu0 %v1109
        %v1111 = vpop.xlane.xlu0 %1110
        %v1112 = vadd.f32 %v1003, %v1005
        %1113 = vadd.xlane.f32.xlu0 %v1112
        %v1114 = vpop.xlane.xlu0 %1113
        %v1115 = vadd.f32 %v1007, %v1009
        %1116 = vadd.xlane.f32.xlu0 %v1115
        %v1117 = vpop.xlane.xlu0 %1116
        %v1118 = vadd.f32 %v1011, %v1013
        %1119 = vadd.xlane.f32.xlu0 %v1118
        %v1120 = vpop.xlane.xlu0 %1119
        %v1121 = vadd.f32 %v1015, %v1017
        %1122 = vadd.xlane.f32.xlu0 %v1121
        %v1123 = vpop.xlane.xlu0 %1122
        %v1124 = vadd.f32 %v1019, %v1021
        %1125 = vadd.xlane.f32.xlu0 %v1124
        %v1126 = vpop.xlane.xlu0 %1125
        %v1127 = vadd.f32 %v1023, %v1025
        %1128 = vadd.xlane.f32.xlu0 %v1127
        %v1129 = vpop.xlane.xlu0 %1128
        %v1130 = vadd.f32 %v1027, %v1029
        %1131 = vadd.xlane.f32.xlu0 %v1130
        %v1132 = vpop.xlane.xlu0 %1131
        %v1133 = vadd.f32 %v1031, %v1033
        %1134 = vadd.xlane.f32.xlu0 %v1133
        %v1135 = vpop.xlane.xlu0 %1134
        %v1136 = vadd.f32 %v1035, %v1037
        %1137 = vadd.xlane.f32.xlu0 %v1136
        %v1138 = vpop.xlane.xlu0 %1137
        %v1139 = vadd.f32 %v1039, %v1041
        %1140 = vadd.xlane.f32.xlu0 %v1139
        %v1141 = vpop.xlane.xlu0 %1140
        %v1142 = vadd.f32 %v1043, %v1045
        %1143 = vadd.xlane.f32.xlu0 %v1142
        %v1144 = vpop.xlane.xlu0 %1143
        %v1145 = vadd.f32 %v1047, %v1049
        %1146 = vadd.xlane.f32.xlu0 %v1145
        %v1147 = vpop.xlane.xlu0 %1146
        %v1148 = vadd.f32 %v1051, %v1053
        %1149 = vadd.xlane.f32.xlu0 %v1148
        %v1150 = vpop.xlane.xlu0 %1149
        %v1151 = vadd.f32 %v1055, %v1057
        %1152 = vadd.xlane.f32.xlu0 %v1151
        %v1153 = vpop.xlane.xlu0 %1152
        %v1154 = vpack.c.bf16 %v935, %v931
        %v1155 = vpack.c.bf16 %v937, %v933
        %v1156 = vpack.c.bf16 %v943, %v939
        %v1157 = vpack.c.bf16 %v945, %v941
        %v1158 = vpack.c.bf16 %v951, %v947
        %v1159 = vpack.c.bf16 %v953, %v949
        %v1160 = vpack.c.bf16 %v959, %v955
        %v1161 = vpack.c.bf16 %v961, %v957
        %v1162 = vpack.c.bf16 %v967, %v963
        %v1163 = vpack.c.bf16 %v969, %v965
        %v1164 = vpack.c.bf16 %v975, %v971
        %v1165 = vpack.c.bf16 %v977, %v973
        %v1166 = vpack.c.bf16 %v983, %v979
        %v1167 = vpack.c.bf16 %v985, %v981
        %v1168 = vpack.c.bf16 %v991, %v987
        %v1169 = vpack.c.bf16 %v993, %v989
        %v1170 = vpack.c.bf16 %v999, %v995
        %v1171 = vpack.c.bf16 %v1001, %v997
        %v1172 = vpack.c.bf16 %v1007, %v1003
        %v1173 = vpack.c.bf16 %v1009, %v1005
        %v1174 = vpack.c.bf16 %v1015, %v1011
        %v1175 = vpack.c.bf16 %v1017, %v1013
        %v1176 = vpack.c.bf16 %v1023, %v1019
        %v1177 = vpack.c.bf16 %v1025, %v1021
        %v1178 = vpack.c.bf16 %v1031, %v1027
        %v1179 = vpack.c.bf16 %v1033, %v1029
        %v1180 = vpack.c.bf16 %v1039, %v1035
        %v1181 = vpack.c.bf16 %v1041, %v1037
        %v1182 = vpack.c.bf16 %v1047, %v1043
        %v1183 = vpack.c.bf16 %v1049, %v1045
        %v1184 = vpack.c.bf16 %v1055, %v1051
        %v1185 = vpack.c.bf16 %v1057, %v1053
        %1186 = vmatprep.subr.bf16.mxu0 0
        %1187 = vmatpush1.bf16.msra.mxu0 %v491
        %1188 = vmatprep.subr.bf16.mxu0 0
        %1189 = vmatpush1.bf16.msra.mxu0 %v492
        %1190 = vmatprep.subr.bf16.mxu0 0
        %1191 = vmatpush1.bf16.msra.mxu0 %v493
        %1192 = vmatprep.subr.bf16.mxu0 0
        %1193 = vmatpush1.bf16.msra.mxu0 %v494
        %1194 = vmatprep.subr.bf16.mxu0 0
        %1195 = vmatpush1.bf16.msra.mxu0 %v495
        %1196 = vmatprep.subr.bf16.mxu0 0
        %1197 = vmatpush1.bf16.msra.mxu0 %v496
        %1198 = vmatprep.subr.bf16.mxu0 0
        %1199 = vmatpush1.bf16.msra.mxu0 %v497
        %1200 = vmatprep.subr.bf16.mxu0 0
        %1201 = vmatpush1.bf16.msra.mxu0 %v498
        %1202 = vmatprep.subr.bf16.mxu0 0
        %1203 = vmatpush1.bf16.msra.mxu0 %v499
        %1204 = vmatprep.subr.bf16.mxu0 0
        %1205 = vmatpush1.bf16.msra.mxu0 %v500
        %1206 = vmatprep.subr.bf16.mxu0 0
        %1207 = vmatpush1.bf16.msra.mxu0 %v501
        %1208 = vmatprep.subr.bf16.mxu0 0
        %1209 = vmatpush1.bf16.msra.mxu0 %v502
        %1210 = vmatprep.subr.bf16.mxu0 0
        %1211 = vmatpush1.bf16.msra.mxu0 %v503
        %1212 = vmatprep.subr.bf16.mxu0 0
        %1213 = vmatpush1.bf16.msra.mxu0 %v504
        %1214 = vmatprep.subr.bf16.mxu0 0
        %1215 = vmatpush1.bf16.msra.mxu0 %v505
        %1216 = vmatprep.subr.bf16.mxu0 0
        %1217 = vmatpush1.bf16.msra.mxu0 %v506
        %1218 = vmatprep.mubr.bf16.mxu0 %v1155
        %1219 = vmatmul.mubr.bf16.gmra.mrb[0].mxu0 %v1154
        %v1220 = vpop.f32.mrb[0].mxu0
        %v1221 = vadd.f32 0.0, %v1220
        %v1222 = vpop.f32.mrb[0].mxu0
        %v1223 = vpop.f32.mrb[0].mxu0
        %v1224 = vadd.f32 0.0, %v1223
        %v1225 = vpop.f32.mrb[0].mxu0
        %1226 = vmatprep.mubr.bf16.mxu0 %v1157
        %1227 = vmatmul.mubr.bf16.gmra.mrb[0].mxu0 %v1156
        %v1228 = vpop.f32.mrb[0].mxu0
        %v1229 = vadd.f32 0.0, %v1228
        %v1230 = vpop.f32.mrb[0].mxu0
        %v1231 = vpop.f32.mrb[0].mxu0
        %v1232 = vadd.f32 0.0, %v1231
        %v1233 = vpop.f32.mrb[0].mxu0
        %1234 = vmatprep.mubr.bf16.mxu0 %v1159
        %1235 = vmatmul.mubr.bf16.gmra.mrb[0].mxu0 %v1158
        %v1236 = vpop.f32.mrb[0].mxu0
        %v1237 = vadd.f32 0.0, %v1236
        %v1238 = vpop.f32.mrb[0].mxu0
        %v1239 = vpop.f32.mrb[0].mxu0
        %v1240 = vadd.f32 0.0, %v1239
        %v1241 = vpop.f32.mrb[0].mxu0
        %1242 = vmatprep.mubr.bf16.mxu0 %v1161
        %1243 = vmatmul.mubr.bf16.gmra.mrb[0].mxu0 %v1160
        %v1244 = vpop.f32.mrb[0].mxu0
        %v1245 = vadd.f32 0.0, %v1244
        %v1246 = vpop.f32.mrb[0].mxu0
        %v1247 = vpop.f32.mrb[0].mxu0
        %v1248 = vadd.f32 0.0, %v1247
        %v1249 = vpop.f32.mrb[0].mxu0
        %1250 = vmatprep.mubr.bf16.mxu0 %v1163
        %1251 = vmatmul.mubr.bf16.gmra.mrb[0].mxu0 %v1162
        %v1252 = vpop.f32.mrb[0].mxu0
        %v1253 = vadd.f32 0.0, %v1252
        %v1254 = vpop.f32.mrb[0].mxu0
        %v1255 = vpop.f32.mrb[0].mxu0
        %v1256 = vadd.f32 0.0, %v1255
        %v1257 = vpop.f32.mrb[0].mxu0
        %1258 = vmatprep.mubr.bf16.mxu0 %v1165
        %1259 = vmatmul.mubr.bf16.gmra.mrb[0].mxu0 %v1164
        %v1260 = vpop.f32.mrb[0].mxu0
        %v1261 = vadd.f32 0.0, %v1260
        %v1262 = vpop.f32.mrb[0].mxu0
        %v1263 = vpop.f32.mrb[0].mxu0
        %v1264 = vadd.f32 0.0, %v1263
        %v1265 = vpop.f32.mrb[0].mxu0
        %1266 = vmatprep.mubr.bf16.mxu0 %v1167
        %1267 = vmatmul.mubr.bf16.gmra.mrb[0].mxu0 %v1166
        %v1268 = vpop.f32.mrb[0].mxu0
        %v1269 = vadd.f32 0.0, %v1268
        %v1270 = vpop.f32.mrb[0].mxu0
        %v1271 = vpop.f32.mrb[0].mxu0
        %v1272 = vadd.f32 0.0, %v1271
        %v1273 = vpop.f32.mrb[0].mxu0
        %1274 = vmatprep.mubr.bf16.mxu0 %v1169
        %1275 = vmatmul.mubr.bf16.gmra.mrb[0].mxu0 %v1168
        %v1276 = vpop.f32.mrb[0].mxu0
        %v1277 = vadd.f32 0.0, %v1276
        %v1278 = vpop.f32.mrb[0].mxu0
        %v1279 = vpop.f32.mrb[0].mxu0
        %v1280 = vadd.f32 0.0, %v1279
        %v1281 = vpop.f32.mrb[0].mxu0
        %1282 = vmatprep.mubr.bf16.mxu0 %v1171
        %1283 = vmatmul.mubr.bf16.gmra.mrb[0].mxu0 %v1170
        %v1284 = vpop.f32.mrb[0].mxu0
        %v1285 = vadd.f32 0.0, %v1284
        %v1286 = vpop.f32.mrb[0].mxu0
        %v1287 = vpop.f32.mrb[0].mxu0
        %v1288 = vadd.f32 0.0, %v1287
        %v1289 = vpop.f32.mrb[0].mxu0
        %1290 = vmatprep.mubr.bf16.mxu0 %v1173
        %1291 = vmatmul.mubr.bf16.gmra.mrb[0].mxu0 %v1172
        %v1292 = vpop.f32.mrb[0].mxu0
        %v1293 = vadd.f32 0.0, %v1292
        %v1294 = vpop.f32.mrb[0].mxu0
        %v1295 = vpop.f32.mrb[0].mxu0
        %v1296 = vadd.f32 0.0, %v1295
        %v1297 = vpop.f32.mrb[0].mxu0
        %1298 = vmatprep.mubr.bf16.mxu0 %v1175
        %1299 = vmatmul.mubr.bf16.gmra.mrb[0].mxu0 %v1174
        %v1300 = vpop.f32.mrb[0].mxu0
        %v1301 = vadd.f32 0.0, %v1300
        %v1302 = vpop.f32.mrb[0].mxu0
        %v1303 = vpop.f32.mrb[0].mxu0
        %v1304 = vadd.f32 0.0, %v1303
        %v1305 = vpop.f32.mrb[0].mxu0
        %1306 = vmatprep.mubr.bf16.mxu0 %v1177
        %1307 = vmatmul.mubr.bf16.gmra.mrb[0].mxu0 %v1176
        %v1308 = vpop.f32.mrb[0].mxu0
        %v1309 = vadd.f32 0.0, %v1308
        %v1310 = vpop.f32.mrb[0].mxu0
        %v1311 = vpop.f32.mrb[0].mxu0
        %v1312 = vadd.f32 0.0, %v1311
        %v1313 = vpop.f32.mrb[0].mxu0
        %1314 = vmatprep.mubr.bf16.mxu0 %v1179
        %1315 = vmatmul.mubr.bf16.gmra.mrb[0].mxu0 %v1178
        %v1316 = vpop.f32.mrb[0].mxu0
        %v1317 = vadd.f32 0.0, %v1316
        %v1318 = vpop.f32.mrb[0].mxu0
        %v1319 = vpop.f32.mrb[0].mxu0
        %v1320 = vadd.f32 0.0, %v1319
        %v1321 = vpop.f32.mrb[0].mxu0
        %1322 = vmatprep.mubr.bf16.mxu0 %v1181
        %1323 = vmatmul.mubr.bf16.gmra.mrb[0].mxu0 %v1180
        %v1324 = vpop.f32.mrb[0].mxu0
        %v1325 = vadd.f32 0.0, %v1324
        %v1326 = vpop.f32.mrb[0].mxu0
        %v1327 = vpop.f32.mrb[0].mxu0
        %v1328 = vadd.f32 0.0, %v1327
        %v1329 = vpop.f32.mrb[0].mxu0
        %1330 = vmatprep.mubr.bf16.mxu0 %v1183
        %1331 = vmatmul.mubr.bf16.gmra.mrb[0].mxu0 %v1182
        %v1332 = vpop.f32.mrb[0].mxu0
        %v1333 = vadd.f32 0.0, %v1332
        %v1334 = vpop.f32.mrb[0].mxu0
        %v1335 = vpop.f32.mrb[0].mxu0
        %v1336 = vadd.f32 0.0, %v1335
        %v1337 = vpop.f32.mrb[0].mxu0
        %1338 = vmatprep.mubr.bf16.mxu0 %v1185
        %1339 = vmatmul.mubr.bf16.gmra.mrb[0].mxu0 %v1184
        %v1340 = vpop.f32.mrb[0].mxu0
        %v1341 = vadd.f32 0.0, %v1340
        %v1342 = vpop.f32.mrb[0].mxu0
        %v1343 = vpop.f32.mrb[0].mxu0
        %v1344 = vadd.f32 0.0, %v1343
        %v1345 = vpop.f32.mrb[0].mxu0
        %1346 = vdwg.mxu0
        %v1347 = vrcp.pop %v1060
        %v1348 = vrcp.pop %v1063
        %v1349 = vrcp.pop %v1066
        %v1350 = vrcp.pop %v1069
        %v1351 = vrcp.pop %v1072
        %v1352 = vrcp.pop %v1075
        %v1353 = vrcp.pop %v1078
        %v1354 = vrcp.pop %v1081
        %v1355 = vrcp.pop %v1084
        %v1356 = vrcp.pop %v1087
        %v1357 = vrcp.pop %v1090
        %v1358 = vrcp.pop %v1093
        %v1359 = vrcp.pop %v1096
        %v1360 = vrcp.pop %v1099
        %v1361 = vrcp.pop %v1102
        %v1362 = vrcp.pop %v1105
        %v1363 = vrcp.pop %v1108
        %v1364 = vrcp.pop %v1111
        %v1365 = vrcp.pop %v1114
        %v1366 = vrcp.pop %v1117
        %v1367 = vrcp.pop %v1120
        %v1368 = vrcp.pop %v1123
        %v1369 = vrcp.pop %v1126
        %v1370 = vrcp.pop %v1129
        %v1371 = vrcp.pop %v1132
        %v1372 = vrcp.pop %v1135
        %v1373 = vrcp.pop %v1138
        %v1374 = vrcp.pop %v1141
        %v1375 = vrcp.pop %v1144
        %v1376 = vrcp.pop %v1147
        %v1377 = vrcp.pop %v1150
        %v1378 = vrcp.pop %v1153
        %v1379 = vmul.f32 %v1221, %v1347
        %v1380 = vmul.f32 %v1224, %v1348
        %v1381 = vmul.f32 %v1229, %v1349
        %v1382 = vmul.f32 %v1232, %v1350
        %v1383 = vmul.f32 %v1237, %v1351
        %v1384 = vmul.f32 %v1240, %v1352
        %v1385 = vmul.f32 %v1245, %v1353
        %v1386 = vmul.f32 %v1248, %v1354
        %v1387 = vmul.f32 %v1253, %v1355
        %v1388 = vmul.f32 %v1256, %v1356
        %v1389 = vmul.f32 %v1261, %v1357
        %v1390 = vmul.f32 %v1264, %v1358
        %v1391 = vmul.f32 %v1269, %v1359
        %v1392 = vmul.f32 %v1272, %v1360
        %v1393 = vmul.f32 %v1277, %v1361
        %v1394 = vmul.f32 %v1280, %v1362
        %v1395 = vmul.f32 %v1285, %v1363
        %v1396 = vmul.f32 %v1288, %v1364
        %v1397 = vmul.f32 %v1293, %v1365
        %v1398 = vmul.f32 %v1296, %v1366
        %v1399 = vmul.f32 %v1301, %v1367
        %v1400 = vmul.f32 %v1304, %v1368
        %v1401 = vmul.f32 %v1309, %v1369
        %v1402 = vmul.f32 %v1312, %v1370
        %v1403 = vmul.f32 %v1317, %v1371
        %v1404 = vmul.f32 %v1320, %v1372
        %v1405 = vmul.f32 %v1325, %v1373
        %v1406 = vmul.f32 %v1328, %v1374
        %v1407 = vmul.f32 %v1333, %v1375
        %v1408 = vmul.f32 %v1336, %v1376
        %v1409 = vmul.f32 %v1341, %v1377
        %v1410 = vmul.f32 %v1344, %v1378
        %1411 = vst [vmem:[%s327] sm:$0xff] %v1379
        %1412 = vst [vmem:[%s327 + $0x8] sm:$0xff] %v1380
        %1413 = vst [vmem:[%s327 + $0x10] sm:$0xff] %v1381
        %1414 = vst [vmem:[%s327 + $0x18] sm:$0xff] %v1382
        %1415 = vst [vmem:[%s327 + $0x20] sm:$0xff] %v1383
        %1416 = vst [vmem:[%s327 + $0x28] sm:$0xff] %v1384
        %1417 = vst [vmem:[%s327 + $0x30] sm:$0xff] %v1385
        %1418 = vst [vmem:[%s327 + $0x38] sm:$0xff] %v1386
        %1419 = vst [vmem:[%s327 + $0x40] sm:$0xff] %v1387
        %1420 = vst [vmem:[%s327 + $0x48] sm:$0xff] %v1388
        %1421 = vst [vmem:[%s327 + $0x50] sm:$0xff] %v1389
        %1422 = vst [vmem:[%s327 + $0x58] sm:$0xff] %v1390
        %1423 = vst [vmem:[%s327 + $0x60] sm:$0xff] %v1391
        %1424 = vst [vmem:[%s327 + $0x68] sm:$0xff] %v1392
        %1425 = vst [vmem:[%s327 + $0x70] sm:$0xff] %v1393
        %1426 = vst [vmem:[%s327 + $0x78] sm:$0xff] %v1394
        %1427 = vst [vmem:[%s327 + $0x80] sm:$0xff] %v1395
        %1428 = vst [vmem:[%s327 + $0x88] sm:$0xff] %v1396
        %1429 = vst [vmem:[%s327 + $0x90] sm:$0xff] %v1397
        %1430 = vst [vmem:[%s327 + $0x98] sm:$0xff] %v1398
        %1431 = vst [vmem:[%s327 + $0xa0] sm:$0xff] %v1399
        %1432 = vst [vmem:[%s327 + $0xa8] sm:$0xff] %v1400
        %1433 = vst [vmem:[%s327 + $0xb0] sm:$0xff] %v1401
        %1434 = vst [vmem:[%s327 + $0xb8] sm:$0xff] %v1402
        %1435 = vst [vmem:[%s327 + $0xc0] sm:$0xff] %v1403
        %1436 = vst [vmem:[%s327 + $0xc8] sm:$0xff] %v1404
        %1437 = vst [vmem:[%s327 + $0xd0] sm:$0xff] %v1405
        %1438 = vst [vmem:[%s327 + $0xd8] sm:$0xff] %v1406
        %1439 = vst [vmem:[%s327 + $0xe0] sm:$0xff] %v1407
        %1440 = vst [vmem:[%s327 + $0xe8] sm:$0xff] %v1408
        %1441 = vst [vmem:[%s327 + $0xf0] sm:$0xff] %v1409
        %1442 = vst [vmem:[%s327 + $0xf8] sm:$0xff] %v1410
        %s1443 = sand.u32 %s150, 1
        %s1444 = scalar_lea.sflag [#allocation6], %s1443
        %s1445 = sand.u32 %s150, 1
        %s1446 = smul.addr %s1445, 256
        %s1447 = scalar_lea.vmem [#allocation12], %s1446
        // Predicated region
        $region53: #{tpu_custom_call.1} parent=35 // pred_check
          %p1448 = pneg %p160
        $region54: #{tpu_custom_call.1} parent=35 // pred_check_branch
          %1450 = sbr.rel (%p1448) target = $region56
        $region55: #{tpu_custom_call.1} parent=35 // pred_region
          %s1451 = smul.u32 32, %s32
          %s1453 = ssub.s32 4096, 4096
          %1454 = vsyncadd %s1444, %s1453
          %s1455 = smul.addr %s31, 32
          %s1456 = sadd.s32 %s1451, %s1455
          %s1457 = smul.addr %s1456, 128
          %s1458 = scalar_lea.hbm %s5, %s1457
          %s1459 = sshll.u32 %s1447, 4
          %s1460 = int_to_ptr.vmem [resolvable:$true] %s1459
          %1465 = dma.vmem_to_hbm [thread:$0]  %s1460, 4096, %s1458, %s1444, 128, 128, 8
        $region56: #{tpu_custom_call.1} parent=35 // pred_fallthru
          _
      $region36: #{tpu_custom_call.1} parent=5 // pred_fallthru
        _
      %p1466 = scmp.le.s32.totalorder 2, %s22
      // Predicated region
      $region57: #{tpu_custom_call.1} parent=5 // pred_check
        %p1467 = pneg %p1466
      $region58: #{tpu_custom_call.1} parent=5 // pred_check_branch
        %1469 = sbr.rel (%p1467) target = $region60
      $region59: #{tpu_custom_call.1} parent=5 // pred_region
        %s1470 = ssub.s32 %s22, 2
        // Predicated region
        $region61: #{tpu_custom_call.1} parent=59 // pred_check
          %p1471 = pneg %p166
        $region62: #{tpu_custom_call.1} parent=59 // pred_check_branch
          %1473 = sbr.rel (%p1471) target = $region64
        $region63: #{tpu_custom_call.1} parent=59 // pred_region
          %s1474 = sand.u32 %s151, 1
          %s1475 = scalar_lea.sflag [#allocation6], %s1474
          %s1476 = sand.u32 %s151, 1
          %s1477 = smul.addr %s1476, 256
          %s1478 = scalar_lea.vmem [#allocation12], %s1477
          %1479 = dma.done %s1475, 4096
        $region64: #{tpu_custom_call.1} parent=59 // pred_fallthru
          _
      $region60: #{tpu_custom_call.1} parent=5 // pred_fallthru
        _
    $region6: #{tpu_custom_call.1} parent=1 // loop_footer
      %s26 = sadd.s32 1, %s22
    $region7: #{tpu_custom_call.1} parent=1 // loop_footer_branch
      %21 = sbr.rel target = $region3
    $region8: #{tpu_custom_call.1} parent=1 // loop_exit
      _
    %1480 = vsyncpa [#allocation5], 1
    %s1481 = scalar_lea.sflag [#allocation5], 1
    %1482 = vsyncpa %s1481, 1
    %1483 = vsyncpa [#allocation8], 1
    %s1484 = scalar_lea.sflag [#allocation8], 1
    %1485 = vsyncpa %s1484, 1
    %1486 = vsyncpa [#allocation11], 1
    %1487 = vsyncpa [#allocation6], 1
    %s1488 = scalar_lea.sflag [#allocation6], 1
    %1489 = vsyncpa %s1488, 1

</llo_original>
